<compile_context>
chip_gen: v7x
topology: tpu7x:2x2x1
jax: 0.10.0
libtpu: 0.0.40
codegen_flags: <defaults>
</compile_context>

<pallas_src>
import jax
import jax.numpy as jnp
from jax import lax
from jax.experimental import pallas as pl
from jax.experimental.pallas import tpu as pltpu

EPS = 1e-5


def _make_kernel(N, H, W, Cin, Cout, identity_shortcut):
    """Build the fused bottleneck kernel for static shapes."""
    cnt = float(N * H * W)  # BN reduction count (per channel)

    def bn_relu(v, a_ref, g_ref, b_ref):
        # v: (N*H, W*C) f32. a_ref: (W*C, W*C) 0/1 fold+broadcast matrix.
        # g_ref / b_ref: (1, W*C) lane-tiled gamma / beta.
        s1 = jnp.sum(v, axis=0, keepdims=True)          # (1, W*C) one-pass sums
        s2 = jnp.sum(v * v, axis=0, keepdims=True)
        ch_sum = jnp.dot(s1, a_ref[...], preferred_element_type=jnp.float32)
        ch_sq = jnp.dot(s2, a_ref[...], preferred_element_type=jnp.float32)
        mean = ch_sum * (1.0 / cnt)
        var = ch_sq * (1.0 / cnt) - mean * mean         # biased variance (PyTorch train)
        scale = g_ref[...] * lax.rsqrt(var + EPS)       # folded BN scale
        shift = b_ref[...] - mean * scale               # folded BN shift
        return jnp.maximum(v * scale + shift, 0.0)      # BN + ReLU in one VPU pass

    def kernel(xp_ref, a_in_ref, a_mid_ref,
               g1_ref, b1_ref, g2_ref, b2_ref, g3_ref, b3_ref,
               w1_ref, sdn_ref, sup_ref, b2w_ref, w4_ref, *rest):
        if identity_shortcut:
            (o_ref,) = rest
        else:
            ws_ref, o_ref = rest

        xp = xp_ref[...].astype(jnp.float32)            # (N*H, W*Cin)

        # ---- bn1 + relu1 + conv1 (1x1, Cin -> Cout) ----
        y1 = bn_relu(xp, a_in_ref, g1_ref, b1_ref).astype(jnp.bfloat16)
        h1 = jnp.dot(y1, w1_ref[...], preferred_element_type=jnp.float32)   # (N*H, W*Cout)

        # ---- bn2 + relu2 + conv2 (3x3, stride 1, pad 1) ----
        y2 = bn_relu(h1, a_mid_ref, g2_ref, b2_ref).astype(jnp.bfloat16)
        # +-1 row shifts (ky taps) with image-boundary zeroing fused into tiny 0/1 matmuls.
        ydn = jnp.dot(sdn_ref[...], y2,
                      preferred_element_type=jnp.float32).astype(jnp.bfloat16)  # row h-1
        yup = jnp.dot(sup_ref[...], y2,
                      preferred_element_type=jnp.float32).astype(jnp.bfloat16)  # row h+1
        h2 = (jnp.dot(ydn, b2w_ref[0], preferred_element_type=jnp.float32) +
              jnp.dot(y2, b2w_ref[1], preferred_element_type=jnp.float32) +
              jnp.dot(yup, b2w_ref[2], preferred_element_type=jnp.float32))     # (N*H, W*Cout)

        # ---- bn3 + relu3 + conv4 (1x1, Cout -> 4*Cout) ----
        y3 = bn_relu(h2, a_mid_ref, g3_ref, b3_ref).astype(jnp.bfloat16)
        h3 = jnp.dot(y3, w4_ref[...], preferred_element_type=jnp.float32)       # (N*H, W*4Cout)

        # ---- shortcut ----
        if identity_shortcut:
            sc = xp                                      # skip the identity matmul
        else:
            sc = jnp.dot(xp.astype(jnp.bfloat16), ws_ref[...],
                         preferred_element_type=jnp.float32)

        o_ref[...] = (h3 + sc).astype(o_ref.dtype)       # lane-dense (512-lane) store

    return kernel


def residual_bottleneck(x_nchw, params, downsample=False):
    """PyTorch-facing wrapper: NCHW in / NCHW out; packs to the lane-dense layout."""
    # TODO(synk): downsample=True (stride 2) path not implemented.
    assert not downsample, "downsample=True not implemented"

    # layout plumbing: NCHW -> NHWC -> (N*H, W*C) packed slab. Kept outside the kernel
    # only because the reference API is NCHW; a NHWC-resident network would skip these.
    x = jnp.transpose(x_nchw, (0, 2, 3, 1))
    N, H, W, Cin = x.shape
    Cout = params["w2"].shape[-1]
    Cexp = 4 * Cout
    NH = N * H
    identity_shortcut = "ws" not in params

    f32, bf16 = jnp.float32, jnp.bfloat16
    eye_w = jnp.eye(W, dtype=f32)

    xp = x.reshape(NH, W * Cin)

    # BN channel-stat fold + broadcast matrices (0/1):  lane_sums @ A -> per-channel
    # totals broadcast back to every (w, c) lane.
    a_in = jnp.kron(jnp.ones((W, W), f32), jnp.eye(Cin, dtype=f32))
    a_mid = jnp.kron(jnp.ones((W, W), f32), jnp.eye(Cout, dtype=f32))

    def tile_lanes(v):  # (C,) -> (1, W*C) with channel fastest (matches packing)
        return jnp.tile(v.reshape(1, -1), (1, W)).astype(f32)

    # Block-diagonal packed 1x1-conv weights (bf16 MXU inputs, f32 accumulation).
    w1p = jnp.kron(eye_w, params["w1"]).astype(bf16)              # (W*Cin,  W*Cout)
    w4p = jnp.kron(eye_w, params["w4"]).astype(bf16)              # (W*Cout, W*Cexp)

    # Banded packed 3x3-conv weights: one (W*Cout, W*Cout) band per ky tap, with the
    # kx taps and the W-direction zero padding folded into the band structure.
    bands = []
    for ky in range(3):
        b = jnp.zeros((W * Cout, W * Cout), f32)
        for kx in range(3):
            b = b + jnp.kron(jnp.eye(W, k=-(kx - 1), dtype=f32), params["w2"][ky, kx])
        bands.append(b)
    b2w = jnp.stack(bands, axis=0).astype(bf16)                   # (3, W*Cout, W*Cout)

    # Row-shift matrices for the ky=0 / ky=2 taps: shift by -/+1 row within each image
    # and zero the rows that would read across the image (H) boundary.
    r = jnp.arange(NH)
    sdn = ((r[:, None] - 1 == r[None, :]) &
           ((r[:, None] % H) != 0)).astype(bf16)                  # reads row h-1
    sup = ((r[:, None] + 1 == r[None, :]) &
           ((r[:, None] % H) != (H - 1))).astype(bf16)            # reads row h+1

    args = [xp, a_in, a_mid,
            tile_lanes(params["g1"]), tile_lanes(params["b1"]),
            tile_lanes(params["g2"]), tile_lanes(params["b2"]),
            tile_lanes(params["g3"]), tile_lanes(params["b3"]),
            w1p, sdn, sup, b2w, w4p]
    if not identity_shortcut:
        args.append(jnp.kron(eye_w, params["ws"]).astype(bf16))   # (W*Cin, W*Cexp)

    flops = 2 * N * H * W * (Cin * Cout + 9 * Cout * Cout + Cout * Cexp +
                             (0 if identity_shortcut else Cin * Cexp))
    bytes_accessed = int(sum(a.size * a.dtype.itemsize for a in args)
                         + NH * W * Cexp * 4)

    vmem = pl.BlockSpec(memory_space=pltpu.MemorySpace.VMEM)
    out = pl.pallas_call(
        _make_kernel(N, H, W, Cin, Cout, identity_shortcut),
        out_shape=jax.ShapeDtypeStruct((NH, W * Cexp), x.dtype),  # lane-dense output
        in_specs=[vmem] * len(args),
        out_specs=vmem,
        compiler_params=pltpu.CompilerParams(vmem_limit_bytes=32 * 1024 * 1024),
        cost_estimate=pl.CostEstimate(flops=flops,
                                      transcendentals=W * (Cin + 2 * Cout),
                                      bytes_accessed=bytes_accessed),
    )(*args)

    return jnp.transpose(out.reshape(N, H, W, Cexp), (0, 3, 1, 2))


def residual_bottleneck_ref(x_nchw, params, mm_dtype=jnp.float32):
    """Pure-JAX reference. mm_dtype controls the conv-input dtype so the bf16 MXU
    path of the kernel can be checked tightly (and f32 loosely)."""
    x = jnp.transpose(x_nchw, (0, 2, 3, 1)).astype(jnp.float32)
    Cin = x.shape[-1]
    Cout = params["w2"].shape[-1]
    Cexp = 4 * Cout
    dn = ("NHWC", "HWIO", "NHWC")

    def bn_relu(v, g, b):
        m = jnp.mean(v, axis=(0, 1, 2), keepdims=True)
        var = jnp.mean((v - m) ** 2, axis=(0, 1, 2), keepdims=True)
        y = (v - m) * lax.rsqrt(var + EPS) * g.reshape(1, 1, 1, -1) + b.reshape(1, 1, 1, -1)
        return jnp.maximum(y, 0.0)

    def conv(v, w, pad):
        return lax.conv_general_dilated(v.astype(mm_dtype), w.astype(mm_dtype),
                                        (1, 1), pad, dimension_numbers=dn,
                                        preferred_element_type=jnp.float32)

    y = bn_relu(x, params["g1"], params["b1"])
    y = conv(y, params["w1"].reshape(1, 1, Cin, Cout), ((0, 0), (0, 0)))
    y = bn_relu(y, params["g2"], params["b2"])
    y = conv(y, params["w2"], ((1, 1), (1, 1)))
    y = bn_relu(y, params["g3"], params["b3"])
    y = conv(y, params["w4"].reshape(1, 1, Cout, Cexp), ((0, 0), (0, 0)))
    if "ws" in params:
        sc = conv(x, params["ws"].reshape(1, 1, Cin, Cexp), ((0, 0), (0, 0)))
    else:
        sc = x
    return jnp.transpose(y + sc, (0, 3, 1, 2))


def init_params(key, Cin, Cout, downsample=False):
    k1, k2, k3, k4 = jax.random.split(key, 4)
    Cexp = 4 * Cout
    params = {
        # BatchNorm affine params (PyTorch default init: gamma=1, beta=0)
        "g1": jnp.ones((Cin,), jnp.float32), "b1": jnp.zeros((Cin,), jnp.float32),
        "g2": jnp.ones((Cout,), jnp.float32), "b2": jnp.zeros((Cout,), jnp.float32),
        "g3": jnp.ones((Cout,), jnp.float32), "b3": jnp.zeros((Cout,), jnp.float32),
        # conv1 1x1 (Cin->Cout), conv2 3x3 HWIO (Cout->Cout), conv4 1x1 (Cout->4*Cout)
        "w1": 0.1 * jax.random.normal(k1, (Cin, Cout), jnp.float32),
        "w2": 0.1 * jax.random.normal(k2, (3, 3, Cout, Cout), jnp.float32),
        "w4": 0.1 * jax.random.normal(k3, (Cout, Cexp), jnp.float32),
    }
    if not (Cexp == Cin and not downsample):       # else nn.Identity shortcut
        params["ws"] = 0.1 * jax.random.normal(k4, (Cin, Cexp), jnp.float32)
    return params


if __name__ == "__main__":
    key = jax.random.PRNGKey(0)
    kx, kp = jax.random.split(key)

    N, Cin, H, W = 2, 4, 16, 16
    Cout = 8                      # expansion output = 32 channels -> 1x1-conv shortcut

    x = jax.random.normal(kx, (N, Cin, H, W), jnp.float32)   # NCHW like PyTorch
    params = init_params(kp, Cin, Cout)

    out = jax.block_until_ready(residual_bottleneck(x, params))
    assert out.shape == (N, 4 * Cout, H, W), out.shape

    # Tight check against a reference that uses the same bf16 MXU inputs.
    ref_b = jax.block_until_ready(residual_bottleneck_ref(x, params, mm_dtype=jnp.bfloat16))
    err_b = float(jnp.max(jnp.abs(out - ref_b)))
    assert jnp.allclose(out, ref_b, atol=2e-3, rtol=2e-3), f"bf16-matched max abs err {err_b}"

    # Loose sanity check against the full-f32 module semantics (bf16 quantization noise).
    ref_f = jax.block_until_ready(residual_bottleneck_ref(x, params, mm_dtype=jnp.float32))
    err_f = float(jnp.max(jnp.abs(out - ref_f)))
    assert jnp.allclose(out, ref_f, atol=1e-1, rtol=1e-1), f"f32 max abs err {err_f}"

    print("KERNEL_OK")
</pallas_src>

<mosaic_0001>
module attributes {stable_mosaic.version = 11 : i64} {
  func.func @kernel(%arg0: memref<32x64xf32, #tpu.memory_space<vmem>>, %arg1: memref<64x64xf32, #tpu.memory_space<vmem>>, %arg2: memref<128x128xf32, #tpu.memory_space<vmem>>, %arg3: memref<1x64xf32, #tpu.memory_space<vmem>>, %arg4: memref<1x64xf32, #tpu.memory_space<vmem>>, %arg5: memref<1x128xf32, #tpu.memory_space<vmem>>, %arg6: memref<1x128xf32, #tpu.memory_space<vmem>>, %arg7: memref<1x128xf32, #tpu.memory_space<vmem>>, %arg8: memref<1x128xf32, #tpu.memory_space<vmem>>, %arg9: memref<64x128xbf16, #tpu.memory_space<vmem>>, %arg10: memref<32x32xbf16, #tpu.memory_space<vmem>>, %arg11: memref<32x32xbf16, #tpu.memory_space<vmem>>, %arg12: memref<3x128x128xbf16, #tpu.memory_space<vmem>>, %arg13: memref<128x512xbf16, #tpu.memory_space<vmem>>, %arg14: memref<64x512xbf16, #tpu.memory_space<vmem>>, %arg15: memref<32x512xf32, #tpu.memory_space<vmem>>) attributes {dimension_semantics = [], scalar_prefetch = 0 : i64, scratch_operands = 0 : i64, tpu.core_type = #tpu.core_type<tc>} {
    %c0 = arith.constant 0 : index
    %c0_0 = arith.constant 0 : index
    %0 = vector.load %arg0[%c0, %c0_0] : memref<32x64xf32, #tpu.memory_space<vmem>>, vector<32x64xf32>
    %cst = arith.constant dense<0.000000e+00> : vector<64xf32>
    %1 = vector.multi_reduction <add>, %0, %cst [0] : vector<32x64xf32> to vector<64xf32>
    %2 = vector.shape_cast %1 : vector<64xf32> to vector<1x64xf32>
    %3 = arith.mulf %0, %0 : vector<32x64xf32>
    %cst_1 = arith.constant dense<0.000000e+00> : vector<64xf32>
    %4 = vector.multi_reduction <add>, %3, %cst_1 [0] : vector<32x64xf32> to vector<64xf32>
    %5 = vector.shape_cast %4 : vector<64xf32> to vector<1x64xf32>
    %c0_2 = arith.constant 0 : index
    %c0_3 = arith.constant 0 : index
    %6 = vector.load %arg1[%c0_2, %c0_3] : memref<64x64xf32, #tpu.memory_space<vmem>>, vector<64x64xf32>
    %cst_4 = arith.constant dense<0.000000e+00> : vector<1x64xf32>
    %7 = tpu.matmul %2, %6, %cst_4 {dimension_numbers = #tpu.dot_dimension_numbers<[1], [0], [0], [1], [0, 0, 1, 1], [], []>} : vector<1x64xf32>, vector<64x64xf32>, vector<1x64xf32> -> vector<1x64xf32>
    %c0_5 = arith.constant 0 : index
    %c0_6 = arith.constant 0 : index
    %8 = vector.load %arg1[%c0_5, %c0_6] : memref<64x64xf32, #tpu.memory_space<vmem>>, vector<64x64xf32>
    %cst_7 = arith.constant dense<0.000000e+00> : vector<1x64xf32>
    %9 = tpu.matmul %5, %8, %cst_7 {dimension_numbers = #tpu.dot_dimension_numbers<[1], [0], [0], [1], [0, 0, 1, 1], [], []>} : vector<1x64xf32>, vector<64x64xf32>, vector<1x64xf32> -> vector<1x64xf32>
    %cst_8 = arith.constant 0.001953125 : f32
    %10 = vector.broadcast %cst_8 : f32 to vector<1x64xf32>
    %11 = arith.mulf %7, %10 : vector<1x64xf32>
    %cst_9 = arith.constant 0.001953125 : f32
    %12 = vector.broadcast %cst_9 : f32 to vector<1x64xf32>
    %13 = arith.mulf %9, %12 : vector<1x64xf32>
    %14 = arith.mulf %11, %11 : vector<1x64xf32>
    %15 = arith.subf %13, %14 : vector<1x64xf32>
    %c0_10 = arith.constant 0 : index
    %c0_11 = arith.constant 0 : index
    %16 = vector.load %arg3[%c0_10, %c0_11] : memref<1x64xf32, #tpu.memory_space<vmem>>, vector<1x64xf32>
    %cst_12 = arith.constant 9.99999974E-6 : f32
    %17 = vector.broadcast %cst_12 : f32 to vector<1x64xf32>
    %18 = arith.addf %15, %17 : vector<1x64xf32>
    %19 = math.rsqrt %18 : vector<1x64xf32>
    %20 = arith.mulf %16, %19 : vector<1x64xf32>
    %c0_13 = arith.constant 0 : index
    %c0_14 = arith.constant 0 : index
    %21 = vector.load %arg4[%c0_13, %c0_14] : memref<1x64xf32, #tpu.memory_space<vmem>>, vector<1x64xf32>
    %22 = arith.mulf %11, %20 : vector<1x64xf32>
    %23 = arith.subf %21, %22 : vector<1x64xf32>
    %24 = vector.broadcast %20 : vector<1x64xf32> to vector<32x64xf32>
    %25 = arith.mulf %0, %24 : vector<32x64xf32>
    %26 = vector.broadcast %23 : vector<1x64xf32> to vector<32x64xf32>
    %27 = arith.addf %25, %26 : vector<32x64xf32>
    %cst_15 = arith.constant 0.000000e+00 : f32
    %28 = vector.broadcast %cst_15 : f32 to vector<32x64xf32>
    %29 = arith.maximumf %27, %28 : vector<32x64xf32>
    %30 = arith.truncf %29 : vector<32x64xf32> to vector<32x64xbf16>
    %c0_16 = arith.constant 0 : index
    %c0_17 = arith.constant 0 : index
    %31 = vector.load %arg9[%c0_16, %c0_17] : memref<64x128xbf16, #tpu.memory_space<vmem>>, vector<64x128xbf16>
    %cst_18 = arith.constant dense<0.000000e+00> : vector<32x128xf32>
    %32 = tpu.matmul %30, %31, %cst_18 {dimension_numbers = #tpu.dot_dimension_numbers<[1], [0], [0], [1], [0, 0, 1, 1], [], []>} : vector<32x64xbf16>, vector<64x128xbf16>, vector<32x128xf32> -> vector<32x128xf32>
    %cst_19 = arith.constant dense<0.000000e+00> : vector<128xf32>
    %33 = vector.multi_reduction <add>, %32, %cst_19 [0] : vector<32x128xf32> to vector<128xf32>
    %34 = vector.shape_cast %33 : vector<128xf32> to vector<1x128xf32>
    %35 = arith.mulf %32, %32 : vector<32x128xf32>
    %cst_20 = arith.constant dense<0.000000e+00> : vector<128xf32>
    %36 = vector.multi_reduction <add>, %35, %cst_20 [0] : vector<32x128xf32> to vector<128xf32>
    %37 = vector.shape_cast %36 : vector<128xf32> to vector<1x128xf32>
    %c0_21 = arith.constant 0 : index
    %c0_22 = arith.constant 0 : index
    %38 = vector.load %arg2[%c0_21, %c0_22] : memref<128x128xf32, #tpu.memory_space<vmem>>, vector<128x128xf32>
    %cst_23 = arith.constant dense<0.000000e+00> : vector<1x128xf32>
    %39 = tpu.matmul %34, %38, %cst_23 {dimension_numbers = #tpu.dot_dimension_numbers<[1], [0], [0], [1], [0, 0, 1, 1], [], []>} : vector<1x128xf32>, vector<128x128xf32>, vector<1x128xf32> -> vector<1x128xf32>
    %c0_24 = arith.constant 0 : index
    %c0_25 = arith.constant 0 : index
    %40 = vector.load %arg2[%c0_24, %c0_25] : memref<128x128xf32, #tpu.memory_space<vmem>>, vector<128x128xf32>
    %cst_26 = arith.constant dense<0.000000e+00> : vector<1x128xf32>
    %41 = tpu.matmul %37, %40, %cst_26 {dimension_numbers = #tpu.dot_dimension_numbers<[1], [0], [0], [1], [0, 0, 1, 1], [], []>} : vector<1x128xf32>, vector<128x128xf32>, vector<1x128xf32> -> vector<1x128xf32>
    %cst_27 = arith.constant 0.001953125 : f32
    %42 = vector.broadcast %cst_27 : f32 to vector<1x128xf32>
    %43 = arith.mulf %39, %42 : vector<1x128xf32>
    %cst_28 = arith.constant 0.001953125 : f32
    %44 = vector.broadcast %cst_28 : f32 to vector<1x128xf32>
    %45 = arith.mulf %41, %44 : vector<1x128xf32>
    %46 = arith.mulf %43, %43 : vector<1x128xf32>
    %47 = arith.subf %45, %46 : vector<1x128xf32>
    %c0_29 = arith.constant 0 : index
    %c0_30 = arith.constant 0 : index
    %48 = vector.load %arg5[%c0_29, %c0_30] : memref<1x128xf32, #tpu.memory_space<vmem>>, vector<1x128xf32>
    %cst_31 = arith.constant 9.99999974E-6 : f32
    %49 = vector.broadcast %cst_31 : f32 to vector<1x128xf32>
    %50 = arith.addf %47, %49 : vector<1x128xf32>
    %51 = math.rsqrt %50 : vector<1x128xf32>
    %52 = arith.mulf %48, %51 : vector<1x128xf32>
    %c0_32 = arith.constant 0 : index
    %c0_33 = arith.constant 0 : index
    %53 = vector.load %arg6[%c0_32, %c0_33] : memref<1x128xf32, #tpu.memory_space<vmem>>, vector<1x128xf32>
    %54 = arith.mulf %43, %52 : vector<1x128xf32>
    %55 = arith.subf %53, %54 : vector<1x128xf32>
    %56 = vector.broadcast %52 : vector<1x128xf32> to vector<32x128xf32>
    %57 = arith.mulf %32, %56 : vector<32x128xf32>
    %58 = vector.broadcast %55 : vector<1x128xf32> to vector<32x128xf32>
    %59 = arith.addf %57, %58 : vector<32x128xf32>
    %cst_34 = arith.constant 0.000000e+00 : f32
    %60 = vector.broadcast %cst_34 : f32 to vector<32x128xf32>
    %61 = arith.maximumf %59, %60 : vector<32x128xf32>
    %62 = arith.truncf %61 : vector<32x128xf32> to vector<32x128xbf16>
    %c0_35 = arith.constant 0 : index
    %c0_36 = arith.constant 0 : index
    %63 = vector.load %arg10[%c0_35, %c0_36] : memref<32x32xbf16, #tpu.memory_space<vmem>>, vector<32x32xbf16>
    %cst_37 = arith.constant dense<0.000000e+00> : vector<32x128xf32>
    %64 = tpu.matmul %63, %62, %cst_37 {dimension_numbers = #tpu.dot_dimension_numbers<[1], [0], [0], [1], [0, 0, 1, 1], [], []>} : vector<32x32xbf16>, vector<32x128xbf16>, vector<32x128xf32> -> vector<32x128xf32>
    %65 = arith.truncf %64 : vector<32x128xf32> to vector<32x128xbf16>
    %c0_38 = arith.constant 0 : index
    %c0_39 = arith.constant 0 : index
    %66 = vector.load %arg11[%c0_38, %c0_39] : memref<32x32xbf16, #tpu.memory_space<vmem>>, vector<32x32xbf16>
    %cst_40 = arith.constant dense<0.000000e+00> : vector<32x128xf32>
    %67 = tpu.matmul %66, %62, %cst_40 {dimension_numbers = #tpu.dot_dimension_numbers<[1], [0], [0], [1], [0, 0, 1, 1], [], []>} : vector<32x32xbf16>, vector<32x128xbf16>, vector<32x128xf32> -> vector<32x128xf32>
    %68 = arith.truncf %67 : vector<32x128xf32> to vector<32x128xbf16>
    %c0_41 = arith.constant 0 : index
    %c0_42 = arith.constant 0 : index
    %c0_43 = arith.constant 0 : index
    %69 = vector.load %arg12[%c0_41, %c0_42, %c0_43] : memref<3x128x128xbf16, #tpu.memory_space<vmem>>, vector<1x128x128xbf16>
    %70 = vector.shape_cast %69 : vector<1x128x128xbf16> to vector<128x128xbf16>
    %cst_44 = arith.constant dense<0.000000e+00> : vector<32x128xf32>
    %71 = tpu.matmul %65, %70, %cst_44 {dimension_numbers = #tpu.dot_dimension_numbers<[1], [0], [0], [1], [0, 0, 1, 1], [], []>} : vector<32x128xbf16>, vector<128x128xbf16>, vector<32x128xf32> -> vector<32x128xf32>
    %c1 = arith.constant 1 : index
    %c0_45 = arith.constant 0 : index
    %c0_46 = arith.constant 0 : index
    %72 = vector.load %arg12[%c1, %c0_45, %c0_46] : memref<3x128x128xbf16, #tpu.memory_space<vmem>>, vector<1x128x128xbf16>
    %73 = vector.shape_cast %72 : vector<1x128x128xbf16> to vector<128x128xbf16>
    %cst_47 = arith.constant dense<0.000000e+00> : vector<32x128xf32>
    %74 = tpu.matmul %62, %73, %cst_47 {dimension_numbers = #tpu.dot_dimension_numbers<[1], [0], [0], [1], [0, 0, 1, 1], [], []>} : vector<32x128xbf16>, vector<128x128xbf16>, vector<32x128xf32> -> vector<32x128xf32>
    %75 = arith.addf %71, %74 : vector<32x128xf32>
    %c2 = arith.constant 2 : index
    %c0_48 = arith.constant 0 : index
    %c0_49 = arith.constant 0 : index
    %76 = vector.load %arg12[%c2, %c0_48, %c0_49] : memref<3x128x128xbf16, #tpu.memory_space<vmem>>, vector<1x128x128xbf16>
    %77 = vector.shape_cast %76 : vector<1x128x128xbf16> to vector<128x128xbf16>
    %cst_50 = arith.constant dense<0.000000e+00> : vector<32x128xf32>
    %78 = tpu.matmul %68, %77, %cst_50 {dimension_numbers = #tpu.dot_dimension_numbers<[1], [0], [0], [1], [0, 0, 1, 1], [], []>} : vector<32x128xbf16>, vector<128x128xbf16>, vector<32x128xf32> -> vector<32x128xf32>
    %79 = arith.addf %75, %78 : vector<32x128xf32>
    %cst_51 = arith.constant dense<0.000000e+00> : vector<128xf32>
    %80 = vector.multi_reduction <add>, %79, %cst_51 [0] : vector<32x128xf32> to vector<128xf32>
    %81 = vector.shape_cast %80 : vector<128xf32> to vector<1x128xf32>
    %82 = arith.mulf %79, %79 : vector<32x128xf32>
    %cst_52 = arith.constant dense<0.000000e+00> : vector<128xf32>
    %83 = vector.multi_reduction <add>, %82, %cst_52 [0] : vector<32x128xf32> to vector<128xf32>
    %84 = vector.shape_cast %83 : vector<128xf32> to vector<1x128xf32>
    %c0_53 = arith.constant 0 : index
    %c0_54 = arith.constant 0 : index
    %85 = vector.load %arg2[%c0_53, %c0_54] : memref<128x128xf32, #tpu.memory_space<vmem>>, vector<128x128xf32>
    %cst_55 = arith.constant dense<0.000000e+00> : vector<1x128xf32>
    %86 = tpu.matmul %81, %85, %cst_55 {dimension_numbers = #tpu.dot_dimension_numbers<[1], [0], [0], [1], [0, 0, 1, 1], [], []>} : vector<1x128xf32>, vector<128x128xf32>, vector<1x128xf32> -> vector<1x128xf32>
    %c0_56 = arith.constant 0 : index
    %c0_57 = arith.constant 0 : index
    %87 = vector.load %arg2[%c0_56, %c0_57] : memref<128x128xf32, #tpu.memory_space<vmem>>, vector<128x128xf32>
    %cst_58 = arith.constant dense<0.000000e+00> : vector<1x128xf32>
    %88 = tpu.matmul %84, %87, %cst_58 {dimension_numbers = #tpu.dot_dimension_numbers<[1], [0], [0], [1], [0, 0, 1, 1], [], []>} : vector<1x128xf32>, vector<128x128xf32>, vector<1x128xf32> -> vector<1x128xf32>
    %cst_59 = arith.constant 0.001953125 : f32
    %89 = vector.broadcast %cst_59 : f32 to vector<1x128xf32>
    %90 = arith.mulf %86, %89 : vector<1x128xf32>
    %cst_60 = arith.constant 0.001953125 : f32
    %91 = vector.broadcast %cst_60 : f32 to vector<1x128xf32>
    %92 = arith.mulf %88, %91 : vector<1x128xf32>
    %93 = arith.mulf %90, %90 : vector<1x128xf32>
    %94 = arith.subf %92, %93 : vector<1x128xf32>
    %c0_61 = arith.constant 0 : index
    %c0_62 = arith.constant 0 : index
    %95 = vector.load %arg7[%c0_61, %c0_62] : memref<1x128xf32, #tpu.memory_space<vmem>>, vector<1x128xf32>
    %cst_63 = arith.constant 9.99999974E-6 : f32
    %96 = vector.broadcast %cst_63 : f32 to vector<1x128xf32>
    %97 = arith.addf %94, %96 : vector<1x128xf32>
    %98 = math.rsqrt %97 : vector<1x128xf32>
    %99 = arith.mulf %95, %98 : vector<1x128xf32>
    %c0_64 = arith.constant 0 : index
    %c0_65 = arith.constant 0 : index
    %100 = vector.load %arg8[%c0_64, %c0_65] : memref<1x128xf32, #tpu.memory_space<vmem>>, vector<1x128xf32>
    %101 = arith.mulf %90, %99 : vector<1x128xf32>
    %102 = arith.subf %100, %101 : vector<1x128xf32>
    %103 = vector.broadcast %99 : vector<1x128xf32> to vector<32x128xf32>
    %104 = arith.mulf %79, %103 : vector<32x128xf32>
    %105 = vector.broadcast %102 : vector<1x128xf32> to vector<32x128xf32>
    %106 = arith.addf %104, %105 : vector<32x128xf32>
    %cst_66 = arith.constant 0.000000e+00 : f32
    %107 = vector.broadcast %cst_66 : f32 to vector<32x128xf32>
    %108 = arith.maximumf %106, %107 : vector<32x128xf32>
    %109 = arith.truncf %108 : vector<32x128xf32> to vector<32x128xbf16>
    %c0_67 = arith.constant 0 : index
    %c0_68 = arith.constant 0 : index
    %110 = vector.load %arg13[%c0_67, %c0_68] : memref<128x512xbf16, #tpu.memory_space<vmem>>, vector<128x512xbf16>
    %cst_69 = arith.constant dense<0.000000e+00> : vector<32x512xf32>
    %111 = tpu.matmul %109, %110, %cst_69 {dimension_numbers = #tpu.dot_dimension_numbers<[1], [0], [0], [1], [0, 0, 1, 1], [], []>} : vector<32x128xbf16>, vector<128x512xbf16>, vector<32x512xf32> -> vector<32x512xf32>
    %112 = arith.truncf %0 : vector<32x64xf32> to vector<32x64xbf16>
    %c0_70 = arith.constant 0 : index
    %c0_71 = arith.constant 0 : index
    %113 = vector.load %arg14[%c0_70, %c0_71] : memref<64x512xbf16, #tpu.memory_space<vmem>>, vector<64x512xbf16>
    %cst_72 = arith.constant dense<0.000000e+00> : vector<32x512xf32>
    %114 = tpu.matmul %112, %113, %cst_72 {dimension_numbers = #tpu.dot_dimension_numbers<[1], [0], [0], [1], [0, 0, 1, 1], [], []>} : vector<32x64xbf16>, vector<64x512xbf16>, vector<32x512xf32> -> vector<32x512xf32>
    %115 = arith.addf %111, %114 : vector<32x512xf32>
    %c0_73 = arith.constant 0 : index
    %c0_74 = arith.constant 0 : index
    %116 = vector.load %arg15[%c0_73, %c0_74] : memref<32x512xf32, #tpu.memory_space<vmem>>, vector<32x512xf32>
    tpu.vector_store %arg15[%c0_73, %c0_74], %115 {strides = array<i32>} : memref<32x512xf32, #tpu.memory_space<vmem>>, vector<32x512xf32>,
    return
  }
}

</mosaic_0001>

<llo_original>
// kernel: tpu_custom_call.1
$region0: #{tpu_custom_call.1}
  #allocation0 [shape = 'u32[]', space=smem, size = 0x4, offset = 0x4, fixed_abs, tag = 'smem constant byte address 0x4 - core index']
  #allocation1 [shape = 'u32[144,128]{1,0:T(1,128)}', space=vmem, size = 0x12000, scoped, tag = 'internal scratch']
  %s0 = inlined_call_operand.hbm [shape: f32[32,64], index: 0, kind: input, shape index: {}]
  %s1 = inlined_call_operand.hbm [shape: f32[64,64], index: 1, kind: input, shape index: {}]
  %s2 = inlined_call_operand.hbm [shape: f32[128,128], index: 2, kind: input, shape index: {}]
  %s3 = inlined_call_operand.vmem [shape: f32[1,64], index: 3, kind: input, shape index: {}]
  %s4 = inlined_call_operand.vmem [shape: f32[1,64], index: 4, kind: input, shape index: {}]
  %s5 = inlined_call_operand.hbm [shape: f32[1,128], index: 5, kind: input, shape index: {}]
  %s6 = inlined_call_operand.hbm [shape: f32[1,128], index: 6, kind: input, shape index: {}]
  %s7 = inlined_call_operand.hbm [shape: f32[1,128], index: 7, kind: input, shape index: {}]
  %s8 = inlined_call_operand.hbm [shape: f32[1,128], index: 8, kind: input, shape index: {}]
  %s9 = inlined_call_operand.vmem [shape: bf16[64,128], index: 9, kind: input, shape index: {}]
  %s10 = inlined_call_operand.hbm [shape: bf16[32,32], index: 10, kind: input, shape index: {}]
  %s11 = inlined_call_operand.hbm [shape: bf16[32,32], index: 11, kind: input, shape index: {}]
  %s12 = inlined_call_operand.hbm [shape: bf16[3,128,128], index: 12, kind: input, shape index: {}]
  %s13 = inlined_call_operand.hbm [shape: bf16[128,512], index: 13, kind: input, shape index: {}]
  %s14 = inlined_call_operand.hbm [shape: bf16[64,512], index: 14, kind: input, shape index: {}]
  %s15 = inlined_call_operand.hbm [shape: f32[32,512], index: 15, kind: output, shape index: {}]
  %s16 = sld [smem:[#allocation0]]
  $region118: #{tpu_custom_call.1} parent=0
    _
  %s18 = ssub.s32 1, %s16
  %s19 = scalar_select 0, %s18, %s16
  $region1: #{tpu_custom_call.1} parent=0
    #allocation2 [shape = 'u8[16384]{0}', space=vmem, size = 0x4000, scoped, tag = 'input window, operand 0, single buffered']
    #allocation3 [shape = 's32[1]{0}', space=sflag, size = 0x4, scoped, tag = 'scoped memory for tpu_custom_call.1']
    #allocation4 [shape = 's32[1]{0}', space=sflag, size = 0x4, scoped, tag = 'scoped memory for tpu_custom_call.1']
    #allocation5 [shape = 'u8[32768]{0}', space=vmem, size = 0x8000, scoped, tag = 'input window, operand 1, single buffered']
    #allocation6 [shape = 's32[1]{0}', space=sflag, size = 0x4, scoped, tag = 'scoped memory for tpu_custom_call.1']
    #allocation7 [shape = 'u8[65536]{0}', space=vmem, size = 0x10000, scoped, tag = 'input window, operand 2, single buffered']
    #allocation8 [shape = 'u8[512]{0}', space=vmem, size = 0x400, scoped, tag = 'input window, operand 5, single buffered']
    #allocation9 [shape = 's32[1]{0}', space=sflag, size = 0x4, scoped, tag = 'scoped memory for tpu_custom_call.1']
    #allocation10 [shape = 'u8[512]{0}', space=vmem, size = 0x400, scoped, tag = 'input window, operand 6, single buffered']
    #allocation11 [shape = 'u8[512]{0}', space=vmem, size = 0x400, scoped, tag = 'input window, operand 7, single buffered']
    #allocation12 [shape = 's32[1]{0}', space=sflag, size = 0x4, scoped, tag = 'scoped memory for tpu_custom_call.1']
    #allocation13 [shape = 'u8[512]{0}', space=vmem, size = 0x400, scoped, tag = 'input window, operand 8, single buffered']
    #allocation14 [shape = 'u8[8192]{0}', space=vmem, size = 0x2000, scoped, tag = 'input window, operand 10, single buffered']
    #allocation15 [shape = 's32[1]{0}', space=sflag, size = 0x4, scoped, tag = 'scoped memory for tpu_custom_call.1']
    #allocation16 [shape = 'u8[8192]{0}', space=vmem, size = 0x2000, scoped, tag = 'input window, operand 11, single buffered']
    #allocation17 [shape = 'u8[98304]{0}', space=vmem, size = 0x18000, scoped, tag = 'input window, operand 12, single buffered']
    #allocation18 [shape = 's32[1]{0}', space=sflag, size = 0x4, scoped, tag = 'scoped memory for tpu_custom_call.1']
    #allocation19 [shape = 'u8[131072]{0}', space=vmem, size = 0x20000, scoped, tag = 'input window, operand 13, single buffered']
    #allocation20 [shape = 'u8[65536]{0}', space=vmem, size = 0x10000, scoped, tag = 'input window, operand 14, single buffered']
    #allocation21 [shape = 's32[1]{0}', space=sflag, size = 0x4, scoped, tag = 'scoped memory for tpu_custom_call.1']
    #allocation22 [shape = 'u8[65536]{0}', space=vmem, size = 0x10000, scoped, tag = 'output window, operand 0, single buffered']
    %20 = vsyncpa [#allocation3], 0
    %21 = vsyncpa [#allocation6], 0
    %22 = vsyncpa [#allocation9], 0
    %23 = vsyncpa [#allocation12], 0
    %24 = vsyncpa [#allocation15], 0
    %25 = vsyncpa [#allocation18], 0
    %26 = vsyncpa [#allocation21], 0
    %27 = vsyncpa [#allocation4], 0
    // Predicated region
    $region2: #{tpu_custom_call.1} parent=1 // pred_check
      _
    $region3: #{tpu_custom_call.1} parent=1 // pred_check_branch
      %29 = sbr.rel (0) target = $region5
    $region4: #{tpu_custom_call.1} parent=1 // pred_region
      %s31 = ssub.s32 512, 512
      %32 = vsyncadd [#allocation3], %s31
      %s33 = sshll.u32 [#allocation2], 4
      %s34 = int_to_ptr.vmem [resolvable:$true] %s33
      %39 = dma.hbm_to_vmem [thread:$0]  %s0, 512, %s34, [#allocation3], 128, 128, 8
    $region5: #{tpu_custom_call.1} parent=1 // pred_fallthru
      _
    // Predicated region
    $region6: #{tpu_custom_call.1} parent=1 // pred_check
      _
    $region7: #{tpu_custom_call.1} parent=1 // pred_check_branch
      %41 = sbr.rel (0) target = $region9
    $region8: #{tpu_custom_call.1} parent=1 // pred_region
      %s43 = ssub.s32 1024, 1024
      %44 = vsyncadd [#allocation6], %s43
      %s45 = sshll.u32 [#allocation5], 4
      %s46 = int_to_ptr.vmem [resolvable:$true] %s45
      %51 = dma.hbm_to_vmem [thread:$0]  %s1, 1024, %s46, [#allocation6], 128, 128, 8
    $region9: #{tpu_custom_call.1} parent=1 // pred_fallthru
      _
    // Predicated region
    $region10: #{tpu_custom_call.1} parent=1 // pred_check
      _
    $region11: #{tpu_custom_call.1} parent=1 // pred_check_branch
      %53 = sbr.rel (0) target = $region13
    $region12: #{tpu_custom_call.1} parent=1 // pred_region
      %s55 = ssub.s32 2048, 2048
      %56 = vsyncadd [#allocation6], %s55
      %s57 = sshll.u32 [#allocation7], 4
      %s58 = int_to_ptr.vmem [resolvable:$true] %s57
      %63 = dma.hbm_to_vmem [thread:$0]  %s2, 2048, %s58, [#allocation6], 128, 128, 8
    $region13: #{tpu_custom_call.1} parent=1 // pred_fallthru
      _
    // Predicated region
    $region14: #{tpu_custom_call.1} parent=1 // pred_check
      _
    $region15: #{tpu_custom_call.1} parent=1 // pred_check_branch
      %65 = sbr.rel (0) target = $region17
    $region16: #{tpu_custom_call.1} parent=1 // pred_region
      _
    $region17: #{tpu_custom_call.1} parent=1 // pred_fallthru
      _
    // Predicated region
    $region18: #{tpu_custom_call.1} parent=1 // pred_check
      _
    $region19: #{tpu_custom_call.1} parent=1 // pred_check_branch
      %67 = sbr.rel (0) target = $region21
    $region20: #{tpu_custom_call.1} parent=1 // pred_region
      _
    $region21: #{tpu_custom_call.1} parent=1 // pred_fallthru
      _
    // Predicated region
    $region22: #{tpu_custom_call.1} parent=1 // pred_check
      _
    $region23: #{tpu_custom_call.1} parent=1 // pred_check_branch
      %69 = sbr.rel (0) target = $region25
    $region24: #{tpu_custom_call.1} parent=1 // pred_region
      %s71 = ssub.s32 16, 16
      %72 = vsyncadd [#allocation9], %s71
      %s74 = sshll.u32 [#allocation8], 4
      %s75 = int_to_ptr.vmem [resolvable:$true] %s74
      %77 = dma.hbm_to_vmem [thread:$0]  %s5, 16, %s75, [#allocation9]
    $region25: #{tpu_custom_call.1} parent=1 // pred_fallthru
      _
    // Predicated region
    $region26: #{tpu_custom_call.1} parent=1 // pred_check
      _
    $region27: #{tpu_custom_call.1} parent=1 // pred_check_branch
      %79 = sbr.rel (0) target = $region29
    $region28: #{tpu_custom_call.1} parent=1 // pred_region
      %s81 = ssub.s32 16, 16
      %82 = vsyncadd [#allocation9], %s81
      %s84 = sshll.u32 [#allocation10], 4
      %s85 = int_to_ptr.vmem [resolvable:$true] %s84
      %87 = dma.hbm_to_vmem [thread:$0]  %s6, 16, %s85, [#allocation9]
    $region29: #{tpu_custom_call.1} parent=1 // pred_fallthru
      _
    // Predicated region
    $region30: #{tpu_custom_call.1} parent=1 // pred_check
      _
    $region31: #{tpu_custom_call.1} parent=1 // pred_check_branch
      %89 = sbr.rel (0) target = $region33
    $region32: #{tpu_custom_call.1} parent=1 // pred_region
      %s91 = ssub.s32 16, 16
      %92 = vsyncadd [#allocation12], %s91
      %s94 = sshll.u32 [#allocation11], 4
      %s95 = int_to_ptr.vmem [resolvable:$true] %s94
      %97 = dma.hbm_to_vmem [thread:$0]  %s7, 16, %s95, [#allocation12]
    $region33: #{tpu_custom_call.1} parent=1 // pred_fallthru
      _
    // Predicated region
    $region34: #{tpu_custom_call.1} parent=1 // pred_check
      _
    $region35: #{tpu_custom_call.1} parent=1 // pred_check_branch
      %99 = sbr.rel (0) target = $region37
    $region36: #{tpu_custom_call.1} parent=1 // pred_region
      %s101 = ssub.s32 16, 16
      %102 = vsyncadd [#allocation12], %s101
      %s104 = sshll.u32 [#allocation13], 4
      %s105 = int_to_ptr.vmem [resolvable:$true] %s104
      %107 = dma.hbm_to_vmem [thread:$0]  %s8, 16, %s105, [#allocation12]
    $region37: #{tpu_custom_call.1} parent=1 // pred_fallthru
      _
    // Predicated region
    $region38: #{tpu_custom_call.1} parent=1 // pred_check
      _
    $region39: #{tpu_custom_call.1} parent=1 // pred_check_branch
      %109 = sbr.rel (0) target = $region41
    $region40: #{tpu_custom_call.1} parent=1 // pred_region
      _
    $region41: #{tpu_custom_call.1} parent=1 // pred_fallthru
      _
    // Predicated region
    $region42: #{tpu_custom_call.1} parent=1 // pred_check
      _
    $region43: #{tpu_custom_call.1} parent=1 // pred_check_branch
      %111 = sbr.rel (0) target = $region45
    $region44: #{tpu_custom_call.1} parent=1 // pred_region
      %s113 = ssub.s32 256, 256
      %114 = vsyncadd [#allocation15], %s113
      %s115 = sshll.u32 [#allocation14], 4
      %s116 = int_to_ptr.vmem [resolvable:$true] %s115
      %121 = dma.hbm_to_vmem [thread:$0]  %s10, 256, %s116, [#allocation15], 64, 64, 4
    $region45: #{tpu_custom_call.1} parent=1 // pred_fallthru
      _
    // Predicated region
    $region46: #{tpu_custom_call.1} parent=1 // pred_check
      _
    $region47: #{tpu_custom_call.1} parent=1 // pred_check_branch
      %123 = sbr.rel (0) target = $region49
    $region48: #{tpu_custom_call.1} parent=1 // pred_region
      %s125 = ssub.s32 256, 256
      %126 = vsyncadd [#allocation15], %s125
      %s127 = sshll.u32 [#allocation16], 4
      %s128 = int_to_ptr.vmem [resolvable:$true] %s127
      %133 = dma.hbm_to_vmem [thread:$0]  %s11, 256, %s128, [#allocation15], 64, 64, 4
    $region49: #{tpu_custom_call.1} parent=1 // pred_fallthru
      _
    // Predicated region
    $region50: #{tpu_custom_call.1} parent=1 // pred_check
      _
    $region51: #{tpu_custom_call.1} parent=1 // pred_check_branch
      %135 = sbr.rel (0) target = $region53
    $region52: #{tpu_custom_call.1} parent=1 // pred_region
      %s137 = ssub.s32 3072, 3072
      %138 = vsyncadd [#allocation18], %s137
      %s139 = sshll.u32 [#allocation17], 4
      %s140 = int_to_ptr.vmem [resolvable:$true] %s139
      %145 = dma.hbm_to_vmem [thread:$0]  %s12, 3072, %s140, [#allocation18], 64, 64, 4
    $region53: #{tpu_custom_call.1} parent=1 // pred_fallthru
      _
    // Predicated region
    $region54: #{tpu_custom_call.1} parent=1 // pred_check
      _
    $region55: #{tpu_custom_call.1} parent=1 // pred_check_branch
      %147 = sbr.rel (0) target = $region57
    $region56: #{tpu_custom_call.1} parent=1 // pred_region
      %s149 = ssub.s32 4096, 4096
      %150 = vsyncadd [#allocation18], %s149
      %s151 = sshll.u32 [#allocation19], 4
      %s152 = int_to_ptr.vmem [resolvable:$true] %s151
      %157 = dma.hbm_to_vmem [thread:$0]  %s13, 4096, %s152, [#allocation18], 256, 256, 16
    $region57: #{tpu_custom_call.1} parent=1 // pred_fallthru
      _
    // Predicated region
    $region58: #{tpu_custom_call.1} parent=1 // pred_check
      _
    $region59: #{tpu_custom_call.1} parent=1 // pred_check_branch
      %159 = sbr.rel (0) target = $region61
    $region60: #{tpu_custom_call.1} parent=1 // pred_region
      %s161 = ssub.s32 2048, 2048
      %162 = vsyncadd [#allocation21], %s161
      %s163 = sshll.u32 [#allocation20], 4
      %s164 = int_to_ptr.vmem [resolvable:$true] %s163
      %169 = dma.hbm_to_vmem [thread:$0]  %s14, 2048, %s164, [#allocation21], 256, 256, 16
    $region61: #{tpu_custom_call.1} parent=1 // pred_fallthru
      _
    // Predicated region
    $region62: #{tpu_custom_call.1} parent=1 // pred_check
      _
    $region63: #{tpu_custom_call.1} parent=1 // pred_check_branch
      %171 = sbr.rel (0) target = $region65
    $region64: #{tpu_custom_call.1} parent=1 // pred_region
      %172 = dma.done [#allocation3], 512
    $region65: #{tpu_custom_call.1} parent=1 // pred_fallthru
      _
    // Predicated region
    $region66: #{tpu_custom_call.1} parent=1 // pred_check
      _
    $region67: #{tpu_custom_call.1} parent=1 // pred_check_branch
      %174 = sbr.rel (0) target = $region69
    $region68: #{tpu_custom_call.1} parent=1 // pred_region
      %175 = dma.done [#allocation6], 1024
    $region69: #{tpu_custom_call.1} parent=1 // pred_fallthru
      _
    // Predicated region
    $region70: #{tpu_custom_call.1} parent=1 // pred_check
      _
    $region71: #{tpu_custom_call.1} parent=1 // pred_check_branch
      %177 = sbr.rel (0) target = $region73
    $region72: #{tpu_custom_call.1} parent=1 // pred_region
      %178 = dma.done [#allocation6], 2048
    $region73: #{tpu_custom_call.1} parent=1 // pred_fallthru
      _
    // Predicated region
    $region74: #{tpu_custom_call.1} parent=1 // pred_check
      _
    $region75: #{tpu_custom_call.1} parent=1 // pred_check_branch
      %180 = sbr.rel (0) target = $region77
    $region76: #{tpu_custom_call.1} parent=1 // pred_region
      %181 = dma.done [#allocation9], 16
    $region77: #{tpu_custom_call.1} parent=1 // pred_fallthru
      _
    // Predicated region
    $region78: #{tpu_custom_call.1} parent=1 // pred_check
      _
    $region79: #{tpu_custom_call.1} parent=1 // pred_check_branch
      %183 = sbr.rel (0) target = $region81
    $region80: #{tpu_custom_call.1} parent=1 // pred_region
      %184 = dma.done [#allocation9], 16
    $region81: #{tpu_custom_call.1} parent=1 // pred_fallthru
      _
    // Predicated region
    $region82: #{tpu_custom_call.1} parent=1 // pred_check
      _
    $region83: #{tpu_custom_call.1} parent=1 // pred_check_branch
      %186 = sbr.rel (0) target = $region85
    $region84: #{tpu_custom_call.1} parent=1 // pred_region
      %187 = dma.done [#allocation12], 16
    $region85: #{tpu_custom_call.1} parent=1 // pred_fallthru
      _
    // Predicated region
    $region86: #{tpu_custom_call.1} parent=1 // pred_check
      _
    $region87: #{tpu_custom_call.1} parent=1 // pred_check_branch
      %189 = sbr.rel (0) target = $region89
    $region88: #{tpu_custom_call.1} parent=1 // pred_region
      %190 = dma.done [#allocation12], 16
    $region89: #{tpu_custom_call.1} parent=1 // pred_fallthru
      _
    // Predicated region
    $region90: #{tpu_custom_call.1} parent=1 // pred_check
      _
    $region91: #{tpu_custom_call.1} parent=1 // pred_check_branch
      %192 = sbr.rel (0) target = $region93
    $region92: #{tpu_custom_call.1} parent=1 // pred_region
      %193 = dma.done [#allocation15], 256
    $region93: #{tpu_custom_call.1} parent=1 // pred_fallthru
      _
    // Predicated region
    $region94: #{tpu_custom_call.1} parent=1 // pred_check
      _
    $region95: #{tpu_custom_call.1} parent=1 // pred_check_branch
      %195 = sbr.rel (0) target = $region97
    $region96: #{tpu_custom_call.1} parent=1 // pred_region
      %196 = dma.done [#allocation15], 256
    $region97: #{tpu_custom_call.1} parent=1 // pred_fallthru
      _
    // Predicated region
    $region98: #{tpu_custom_call.1} parent=1 // pred_check
      _
    $region99: #{tpu_custom_call.1} parent=1 // pred_check_branch
      %198 = sbr.rel (0) target = $region101
    $region100: #{tpu_custom_call.1} parent=1 // pred_region
      %199 = dma.done [#allocation18], 3072
    $region101: #{tpu_custom_call.1} parent=1 // pred_fallthru
      _
    // Predicated region
    $region102: #{tpu_custom_call.1} parent=1 // pred_check
      _
    $region103: #{tpu_custom_call.1} parent=1 // pred_check_branch
      %201 = sbr.rel (0) target = $region105
    $region104: #{tpu_custom_call.1} parent=1 // pred_region
      %202 = dma.done [#allocation18], 4096
    $region105: #{tpu_custom_call.1} parent=1 // pred_fallthru
      _
    // Predicated region
    $region106: #{tpu_custom_call.1} parent=1 // pred_check
      _
    $region107: #{tpu_custom_call.1} parent=1 // pred_check_branch
      %204 = sbr.rel (0) target = $region109
    $region108: #{tpu_custom_call.1} parent=1 // pred_region
      %205 = dma.done [#allocation21], 2048
    $region109: #{tpu_custom_call.1} parent=1 // pred_fallthru
      _
    %v207 = vld [vmem:[#allocation2] sm:$0xff]
    %v208 = vld [vmem:[#allocation2 + $0x8] sm:$0xff]
    %v209 = vld [vmem:[#allocation2 + $0x10] sm:$0xff]
    %v210 = vld [vmem:[#allocation2 + $0x18] sm:$0xff]
    %vm211 = vcmask 523264
    %v212 = vsel %vm211, %v207, 0.0
    %v213 = vsel %vm211, %v208, 0.0
    %v214 = vadd.f32 %v212, %v213
    %v215 = vsel %vm211, %v209, 0.0
    %v216 = vadd.f32 %v214, %v215
    %v217 = vsel %vm211, %v210, 0.0
    %v218 = vadd.f32 %v216, %v217
    %v219 = vrot.slane %v218, 4
    %v220 = vadd.f32 %v218, %v219
    %v221 = vrot.slane %v220, 2
    %v222 = vadd.f32 %v220, %v221
    %v223 = vrot.slane %v222, 1
    %v224 = vadd.f32 %v222, %v223
    %v225 = vmul.f32 %v207, %v207
    %v226 = vmul.f32 %v208, %v208
    %v227 = vmul.f32 %v209, %v209
    %v228 = vmul.f32 %v210, %v210
    %v229 = vsel %vm211, %v225, 0.0
    %v230 = vsel %vm211, %v226, 0.0
    %v231 = vadd.f32 %v229, %v230
    %v232 = vsel %vm211, %v227, 0.0
    %v233 = vadd.f32 %v231, %v232
    %v234 = vsel %vm211, %v228, 0.0
    %v235 = vadd.f32 %v233, %v234
    %v236 = vrot.slane %v235, 4
    %v237 = vadd.f32 %v235, %v236
    %v238 = vrot.slane %v237, 2
    %v239 = vadd.f32 %v237, %v238
    %v240 = vrot.slane %v239, 1
    %v241 = vadd.f32 %v239, %v240
    %v242 = vld [vmem:[#allocation5] sm:$0xff]
    %v243 = vld [vmem:[#allocation5 + $0x8] sm:$0xff]
    %v244 = vld [vmem:[#allocation5 + $0x10] sm:$0xff]
    %v245 = vld [vmem:[#allocation5 + $0x18] sm:$0xff]
    %v246 = vld [vmem:[#allocation5 + $0x20] sm:$0xff]
    %v247 = vld [vmem:[#allocation5 + $0x28] sm:$0xff]
    %v248 = vld [vmem:[#allocation5 + $0x30] sm:$0xff]
    %v249 = vld [vmem:[#allocation5 + $0x38] sm:$0xff]
    %v251 = vsel %vm211, %v224, 0
    %253 = vmatprep.subr.mxu0 0.0
    %254 = vmatpush1.msra.mxu0 %v242
    %255 = vmatprep.subr.mxu0 0.0
    %256 = vmatpush1.msra.mxu0 %v243
    %257 = vmatprep.subr.mxu0 0.0
    %258 = vmatpush1.msra.mxu0 %v244
    %259 = vmatprep.subr.mxu0 0.0
    %260 = vmatpush1.msra.mxu0 %v245
    %261 = vmatprep.subr.mxu0 0.0
    %262 = vmatpush1.msra.mxu0 %v246
    %263 = vmatprep.subr.mxu0 0.0
    %264 = vmatpush1.msra.mxu0 %v247
    %265 = vmatprep.subr.mxu0 0.0
    %266 = vmatpush1.msra.mxu0 %v248
    %267 = vmatprep.subr.mxu0 0.0
    %268 = vmatpush1.msra.mxu0 %v249
    %269 = vmatprep.subr.mxu0 0.0
    %270 = vmatpush1.msra.mxu0 0.0
    %271 = vmatprep.subr.mxu0 0.0
    %272 = vmatpush1.msra.mxu0 0.0
    %273 = vmatprep.subr.mxu0 0.0
    %274 = vmatpush1.msra.mxu0 0.0
    %275 = vmatprep.subr.mxu0 0.0
    %276 = vmatpush1.msra.mxu0 0.0
    %277 = vmatprep.subr.mxu0 0.0
    %278 = vmatpush1.msra.mxu0 0.0
    %279 = vmatprep.subr.mxu0 0.0
    %280 = vmatpush1.msra.mxu0 0.0
    %281 = vmatprep.subr.mxu0 0.0
    %282 = vmatpush1.msra.mxu0 0.0
    %283 = vmatprep.subr.mxu0 0.0
    %284 = vmatpush1.msra.mxu0 0.0
    %285 = vmatprep.subr.mxu0 0.0
    %286 = vmatpush1.msra.mxu0 0.0
    %287 = vmatprep.subr.mxu0 0.0
    %288 = vmatpush1.msra.mxu0 0.0
    %289 = vmatprep.subr.mxu0 0.0
    %290 = vmatpush1.msra.mxu0 0.0
    %291 = vmatprep.subr.mxu0 0.0
    %292 = vmatpush1.msra.mxu0 0.0
    %293 = vmatprep.subr.mxu0 0.0
    %294 = vmatpush1.msra.mxu0 0.0
    %295 = vmatprep.subr.mxu0 0.0
    %296 = vmatpush1.msra.mxu0 0.0
    %297 = vmatprep.subr.mxu0 0.0
    %298 = vmatpush1.msra.mxu0 0.0
    %299 = vmatprep.subr.mxu0 0.0
    %300 = vmatpush1.msra.mxu0 0.0
    %301 = vmatprep.subr.mxu0 0.0
    %302 = vmatpush1.msra.mxu0 0.0
    %303 = vmatprep.subr.mxu0 0.0
    %304 = vmatpush1.msra.mxu0 0.0
    %305 = vmatprep.subr.mxu0 0.0
    %306 = vmatpush1.msra.mxu0 0.0
    %307 = vmatprep.subr.mxu0 0.0
    %308 = vmatpush1.msra.mxu0 0.0
    %309 = vmatprep.subr.mxu0 0.0
    %310 = vmatpush1.msra.mxu0 0.0
    %311 = vmatprep.subr.mxu0 0.0
    %312 = vmatpush1.msra.mxu0 0.0
    %313 = vmatprep.subr.mxu0 0.0
    %314 = vmatpush1.msra.mxu0 0.0
    %315 = vmatprep.subr.mxu0 0.0
    %316 = vmatpush1.msra.mxu0 0.0
    %317 = vmatprep.mubr.f32.mxu0 0.0
    %318 = vmatmul.mubr.f32.gmra.mrb[0].mxu0 %v251
    %v319 = vpop.f32.mrb[0].mxu0
    %v320 = vadd.f32 0.0, %v319
    %v321 = vpop.f32.mrb[0].mxu0
    %322 = vdwg.mxu0
    %v324 = vsel %vm211, %v241, 0
    %326 = vmatprep.subr.mxu0 0.0
    %327 = vmatpush1.msra.mxu0 %v242
    %328 = vmatprep.subr.mxu0 0.0
    %329 = vmatpush1.msra.mxu0 %v243
    %330 = vmatprep.subr.mxu0 0.0
    %331 = vmatpush1.msra.mxu0 %v244
    %332 = vmatprep.subr.mxu0 0.0
    %333 = vmatpush1.msra.mxu0 %v245
    %334 = vmatprep.subr.mxu0 0.0
    %335 = vmatpush1.msra.mxu0 %v246
    %336 = vmatprep.subr.mxu0 0.0
    %337 = vmatpush1.msra.mxu0 %v247
    %338 = vmatprep.subr.mxu0 0.0
    %339 = vmatpush1.msra.mxu0 %v248
    %340 = vmatprep.subr.mxu0 0.0
    %341 = vmatpush1.msra.mxu0 %v249
    %342 = vmatprep.subr.mxu0 0.0
    %343 = vmatpush1.msra.mxu0 0.0
    %344 = vmatprep.subr.mxu0 0.0
    %345 = vmatpush1.msra.mxu0 0.0
    %346 = vmatprep.subr.mxu0 0.0
    %347 = vmatpush1.msra.mxu0 0.0
    %348 = vmatprep.subr.mxu0 0.0
    %349 = vmatpush1.msra.mxu0 0.0
    %350 = vmatprep.subr.mxu0 0.0
    %351 = vmatpush1.msra.mxu0 0.0
    %352 = vmatprep.subr.mxu0 0.0
    %353 = vmatpush1.msra.mxu0 0.0
    %354 = vmatprep.subr.mxu0 0.0
    %355 = vmatpush1.msra.mxu0 0.0
    %356 = vmatprep.subr.mxu0 0.0
    %357 = vmatpush1.msra.mxu0 0.0
    %358 = vmatprep.subr.mxu0 0.0
    %359 = vmatpush1.msra.mxu0 0.0
    %360 = vmatprep.subr.mxu0 0.0
    %361 = vmatpush1.msra.mxu0 0.0
    %362 = vmatprep.subr.mxu0 0.0
    %363 = vmatpush1.msra.mxu0 0.0
    %364 = vmatprep.subr.mxu0 0.0
    %365 = vmatpush1.msra.mxu0 0.0
    %366 = vmatprep.subr.mxu0 0.0
    %367 = vmatpush1.msra.mxu0 0.0
    %368 = vmatprep.subr.mxu0 0.0
    %369 = vmatpush1.msra.mxu0 0.0
    %370 = vmatprep.subr.mxu0 0.0
    %371 = vmatpush1.msra.mxu0 0.0
    %372 = vmatprep.subr.mxu0 0.0
    %373 = vmatpush1.msra.mxu0 0.0
    %374 = vmatprep.subr.mxu0 0.0
    %375 = vmatpush1.msra.mxu0 0.0
    %376 = vmatprep.subr.mxu0 0.0
    %377 = vmatpush1.msra.mxu0 0.0
    %378 = vmatprep.subr.mxu0 0.0
    %379 = vmatpush1.msra.mxu0 0.0
    %380 = vmatprep.subr.mxu0 0.0
    %381 = vmatpush1.msra.mxu0 0.0
    %382 = vmatprep.subr.mxu0 0.0
    %383 = vmatpush1.msra.mxu0 0.0
    %384 = vmatprep.subr.mxu0 0.0
    %385 = vmatpush1.msra.mxu0 0.0
    %386 = vmatprep.subr.mxu0 0.0
    %387 = vmatpush1.msra.mxu0 0.0
    %388 = vmatprep.subr.mxu0 0.0
    %389 = vmatpush1.msra.mxu0 0.0
    %390 = vmatprep.mubr.f32.mxu0 0.0
    %391 = vmatmul.mubr.f32.gmra.mrb[0].mxu0 %v324
    %v392 = vpop.f32.mrb[0].mxu0
    %v393 = vadd.f32 0.0, %v392
    %v394 = vpop.f32.mrb[0].mxu0
    %395 = vdwg.mxu0
    %v396 = vmul.f32 %v320, 0.001953125
    %v397 = vmul.f32 %v393, 0.001953125
    %v398 = vmul.f32 %v396, %v396
    %v399 = vsub.f32 %v397, %v398
    %v400 = vld [vmem:[%s3] sm:$0x1]
    %v401 = vadd.f32 %v399, 1e-05
    %v402 = vrsqrt.pop %v401
    %v403 = vmul.f32 %v400, %v402
    %v404 = vld [vmem:[%s4] sm:$0x1]
    %v405 = vmul.f32 %v396, %v403
    %v406 = vsub.f32 %v404, %v405
    %v408 = vlaneseq
    %v409 = vshrl.u32 %v408, 7
    %v410 = vsub.s32 0, %v409
    %v411 = vrot.slane %v403, %v410
    %v413 = vmul.f32 %v207, %v411
    %v414 = vmul.f32 %v208, %v411
    %v415 = vmul.f32 %v209, %v411
    %v416 = vmul.f32 %v210, %v411
    %v418 = vlaneseq
    %v419 = vshrl.u32 %v418, 7
    %v420 = vsub.s32 0, %v419
    %v421 = vrot.slane %v406, %v420
    %v423 = vadd.f32 %v413, %v421
    %v424 = vadd.f32 %v414, %v421
    %v425 = vadd.f32 %v415, %v421
    %v426 = vadd.f32 %v416, %v421
    %v427 = vmax.f32 %v423, 0.0
    %v428 = vmax.f32 %v424, 0.0
    %v429 = vmax.f32 %v425, 0.0
    %v430 = vmax.f32 %v426, 0.0
    %v431 = vpack.c.bf16 %v428, %v427
    %v432 = vpack.c.bf16 %v430, %v429
    %v433 = vld [vmem:[%s9] sm:$0xf]
    %v434 = vld [vmem:[%s9 + $0x4] sm:$0xf]
    %v435 = vld [vmem:[%s9 + $0x8] sm:$0xf]
    %v436 = vld [vmem:[%s9 + $0xc] sm:$0xf]
    %v437 = vld [vmem:[%s9 + $0x10] sm:$0xf]
    %v438 = vld [vmem:[%s9 + $0x14] sm:$0xf]
    %v439 = vld [vmem:[%s9 + $0x18] sm:$0xf]
    %v440 = vld [vmem:[%s9 + $0x1c] sm:$0xf]
    %v449 = vunpack.c.l.b16 %v433
    %v450 = vunpack.c.l.b16 %v434
    %v451 = vunpack.c.l.b16 %v435
    %v452 = vunpack.c.l.b16 %v436
    %v453 = vunpack.c.l.b16 %v437
    %v454 = vunpack.c.l.b16 %v438
    %v455 = vunpack.c.l.b16 %v439
    %v456 = vunpack.c.l.b16 %v440
    %v457 = vpack.c.b16 %v450, %v449
    %v458 = vpack.c.b16 %v452, %v451
    %v459 = vpack.c.b16 %v454, %v453
    %v460 = vpack.c.b16 %v456, %v455
    %v466 = vsel %vm211, %v431, 0
    %v469 = vsel %vm211, %v432, 0
    %471 = vmatprep.subr.bf16.mxu0 0
    %472 = vmatpush1.bf16.msra.mxu0 %v457
    %473 = vmatprep.subr.bf16.mxu0 0
    %474 = vmatpush1.bf16.msra.mxu0 %v458
    %475 = vmatprep.subr.bf16.mxu0 0
    %476 = vmatpush1.bf16.msra.mxu0 %v459
    %477 = vmatprep.subr.bf16.mxu0 0
    %478 = vmatpush1.bf16.msra.mxu0 %v460
    %479 = vmatprep.subr.bf16.mxu0 0
    %480 = vmatpush1.bf16.msra.mxu0 0
    %481 = vmatprep.subr.bf16.mxu0 0
    %482 = vmatpush1.bf16.msra.mxu0 0
    %483 = vmatprep.subr.bf16.mxu0 0
    %484 = vmatpush1.bf16.msra.mxu0 0
    %485 = vmatprep.subr.bf16.mxu0 0
    %486 = vmatpush1.bf16.msra.mxu0 0
    %487 = vmatprep.subr.bf16.mxu0 0
    %488 = vmatpush1.bf16.msra.mxu0 0
    %489 = vmatprep.subr.bf16.mxu0 0
    %490 = vmatpush1.bf16.msra.mxu0 0
    %491 = vmatprep.subr.bf16.mxu0 0
    %492 = vmatpush1.bf16.msra.mxu0 0
    %493 = vmatprep.subr.bf16.mxu0 0
    %494 = vmatpush1.bf16.msra.mxu0 0
    %495 = vmatprep.subr.bf16.mxu0 0
    %496 = vmatpush1.bf16.msra.mxu0 0
    %497 = vmatprep.subr.bf16.mxu0 0
    %498 = vmatpush1.bf16.msra.mxu0 0
    %499 = vmatprep.subr.bf16.mxu0 0
    %500 = vmatpush1.bf16.msra.mxu0 0
    %501 = vmatprep.subr.bf16.mxu0 0
    %502 = vmatpush1.bf16.msra.mxu0 0
    %503 = vmatprep.mubr.bf16.mxu0 0
    %504 = vmatmul.mubr.bf16.gmra.mrb[0].mxu0 %v466
    %v505 = vpop.f32.mrb[0].mxu0
    %v506 = vadd.f32 0.0, %v505
    %v507 = vpop.f32.mrb[0].mxu0
    %v508 = vpop.f32.mrb[0].mxu0
    %v509 = vadd.f32 0.0, %v508
    %v510 = vpop.f32.mrb[0].mxu0
    %511 = vmatprep.mubr.bf16.mxu0 0
    %512 = vmatmul.mubr.bf16.gmra.mrb[0].mxu0 %v469
    %v513 = vpop.f32.mrb[0].mxu0
    %v514 = vadd.f32 0.0, %v513
    %v515 = vpop.f32.mrb[0].mxu0
    %v516 = vpop.f32.mrb[0].mxu0
    %v517 = vadd.f32 0.0, %v516
    %v518 = vpop.f32.mrb[0].mxu0
    %519 = vdwg.mxu0
    %v520 = vadd.f32 %v506, %v509
    %v521 = vadd.f32 %v520, %v514
    %v522 = vadd.f32 %v521, %v517
    %v523 = vrot.slane %v522, 4
    %v524 = vadd.f32 %v522, %v523
    %v525 = vrot.slane %v524, 2
    %v526 = vadd.f32 %v524, %v525
    %v527 = vrot.slane %v526, 1
    %v528 = vadd.f32 %v526, %v527
    %v529 = vmul.f32 %v506, %v506
    %v530 = vmul.f32 %v509, %v509
    %v531 = vmul.f32 %v514, %v514
    %v532 = vmul.f32 %v517, %v517
    %v533 = vadd.f32 %v529, %v530
    %v534 = vadd.f32 %v533, %v531
    %v535 = vadd.f32 %v534, %v532
    %v536 = vrot.slane %v535, 4
    %v537 = vadd.f32 %v535, %v536
    %v538 = vrot.slane %v537, 2
    %v539 = vadd.f32 %v537, %v538
    %v540 = vrot.slane %v539, 1
    %v541 = vadd.f32 %v539, %v540
    %v542 = vld [vmem:[#allocation7] sm:$0xff]
    %v543 = vld [vmem:[#allocation7 + $0x8] sm:$0xff]
    %v544 = vld [vmem:[#allocation7 + $0x10] sm:$0xff]
    %v545 = vld [vmem:[#allocation7 + $0x18] sm:$0xff]
    %v546 = vld [vmem:[#allocation7 + $0x20] sm:$0xff]
    %v547 = vld [vmem:[#allocation7 + $0x28] sm:$0xff]
    %v548 = vld [vmem:[#allocation7 + $0x30] sm:$0xff]
    %v549 = vld [vmem:[#allocation7 + $0x38] sm:$0xff]
    %v550 = vld [vmem:[#allocation7 + $0x40] sm:$0xff]
    %v551 = vld [vmem:[#allocation7 + $0x48] sm:$0xff]
    %v552 = vld [vmem:[#allocation7 + $0x50] sm:$0xff]
    %v553 = vld [vmem:[#allocation7 + $0x58] sm:$0xff]
    %v554 = vld [vmem:[#allocation7 + $0x60] sm:$0xff]
    %v555 = vld [vmem:[#allocation7 + $0x68] sm:$0xff]
    %v556 = vld [vmem:[#allocation7 + $0x70] sm:$0xff]
    %v557 = vld [vmem:[#allocation7 + $0x78] sm:$0xff]
    %558 = vmatprep.subr.mxu0 0.0
    %559 = vmatpush1.msra.mxu0 %v542
    %560 = vmatprep.subr.mxu0 0.0
    %561 = vmatpush1.msra.mxu0 %v543
    %562 = vmatprep.subr.mxu0 0.0
    %563 = vmatpush1.msra.mxu0 %v544
    %564 = vmatprep.subr.mxu0 0.0
    %565 = vmatpush1.msra.mxu0 %v545
    %566 = vmatprep.subr.mxu0 0.0
    %567 = vmatpush1.msra.mxu0 %v546
    %568 = vmatprep.subr.mxu0 0.0
    %569 = vmatpush1.msra.mxu0 %v547
    %570 = vmatprep.subr.mxu0 0.0
    %571 = vmatpush1.msra.mxu0 %v548
    %572 = vmatprep.subr.mxu0 0.0
    %573 = vmatpush1.msra.mxu0 %v549
    %574 = vmatprep.subr.mxu0 0.0
    %575 = vmatpush1.msra.mxu0 %v550
    %576 = vmatprep.subr.mxu0 0.0
    %577 = vmatpush1.msra.mxu0 %v551
    %578 = vmatprep.subr.mxu0 0.0
    %579 = vmatpush1.msra.mxu0 %v552
    %580 = vmatprep.subr.mxu0 0.0
    %581 = vmatpush1.msra.mxu0 %v553
    %582 = vmatprep.subr.mxu0 0.0
    %583 = vmatpush1.msra.mxu0 %v554
    %584 = vmatprep.subr.mxu0 0.0
    %585 = vmatpush1.msra.mxu0 %v555
    %586 = vmatprep.subr.mxu0 0.0
    %587 = vmatpush1.msra.mxu0 %v556
    %588 = vmatprep.subr.mxu0 0.0
    %589 = vmatpush1.msra.mxu0 %v557
    %590 = vmatprep.subr.mxu0 0.0
    %591 = vmatpush1.msra.mxu0 0.0
    %592 = vmatprep.subr.mxu0 0.0
    %593 = vmatpush1.msra.mxu0 0.0
    %594 = vmatprep.subr.mxu0 0.0
    %595 = vmatpush1.msra.mxu0 0.0
    %596 = vmatprep.subr.mxu0 0.0
    %597 = vmatpush1.msra.mxu0 0.0
    %598 = vmatprep.subr.mxu0 0.0
    %599 = vmatpush1.msra.mxu0 0.0
    %600 = vmatprep.subr.mxu0 0.0
    %601 = vmatpush1.msra.mxu0 0.0
    %602 = vmatprep.subr.mxu0 0.0
    %603 = vmatpush1.msra.mxu0 0.0
    %604 = vmatprep.subr.mxu0 0.0
    %605 = vmatpush1.msra.mxu0 0.0
    %606 = vmatprep.subr.mxu0 0.0
    %607 = vmatpush1.msra.mxu0 0.0
    %608 = vmatprep.subr.mxu0 0.0
    %609 = vmatpush1.msra.mxu0 0.0
    %610 = vmatprep.subr.mxu0 0.0
    %611 = vmatpush1.msra.mxu0 0.0
    %612 = vmatprep.subr.mxu0 0.0
    %613 = vmatpush1.msra.mxu0 0.0
    %614 = vmatprep.subr.mxu0 0.0
    %615 = vmatpush1.msra.mxu0 0.0
    %616 = vmatprep.subr.mxu0 0.0
    %617 = vmatpush1.msra.mxu0 0.0
    %618 = vmatprep.subr.mxu0 0.0
    %619 = vmatpush1.msra.mxu0 0.0
    %620 = vmatprep.subr.mxu0 0.0
    %621 = vmatpush1.msra.mxu0 0.0
    %622 = vmatprep.mubr.f32.mxu0 0.0
    %623 = vmatmul.mubr.f32.gmra.mrb[0].mxu0 %v528
    %v624 = vpop.f32.mrb[0].mxu0
    %v625 = vadd.f32 0.0, %v624
    %v626 = vpop.f32.mrb[0].mxu0
    %627 = vdwg.mxu0
    %628 = vmatprep.subr.mxu0 0.0
    %629 = vmatpush1.msra.mxu0 %v542
    %630 = vmatprep.subr.mxu0 0.0
    %631 = vmatpush1.msra.mxu0 %v543
    %632 = vmatprep.subr.mxu0 0.0
    %633 = vmatpush1.msra.mxu0 %v544
    %634 = vmatprep.subr.mxu0 0.0
    %635 = vmatpush1.msra.mxu0 %v545
    %636 = vmatprep.subr.mxu0 0.0
    %637 = vmatpush1.msra.mxu0 %v546
    %638 = vmatprep.subr.mxu0 0.0
    %639 = vmatpush1.msra.mxu0 %v547
    %640 = vmatprep.subr.mxu0 0.0
    %641 = vmatpush1.msra.mxu0 %v548
    %642 = vmatprep.subr.mxu0 0.0
    %643 = vmatpush1.msra.mxu0 %v549
    %644 = vmatprep.subr.mxu0 0.0
    %645 = vmatpush1.msra.mxu0 %v550
    %646 = vmatprep.subr.mxu0 0.0
    %647 = vmatpush1.msra.mxu0 %v551
    %648 = vmatprep.subr.mxu0 0.0
    %649 = vmatpush1.msra.mxu0 %v552
    %650 = vmatprep.subr.mxu0 0.0
    %651 = vmatpush1.msra.mxu0 %v553
    %652 = vmatprep.subr.mxu0 0.0
    %653 = vmatpush1.msra.mxu0 %v554
    %654 = vmatprep.subr.mxu0 0.0
    %655 = vmatpush1.msra.mxu0 %v555
    %656 = vmatprep.subr.mxu0 0.0
    %657 = vmatpush1.msra.mxu0 %v556
    %658 = vmatprep.subr.mxu0 0.0
    %659 = vmatpush1.msra.mxu0 %v557
    %660 = vmatprep.subr.mxu0 0.0
    %661 = vmatpush1.msra.mxu0 0.0
    %662 = vmatprep.subr.mxu0 0.0
    %663 = vmatpush1.msra.mxu0 0.0
    %664 = vmatprep.subr.mxu0 0.0
    %665 = vmatpush1.msra.mxu0 0.0
    %666 = vmatprep.subr.mxu0 0.0
    %667 = vmatpush1.msra.mxu0 0.0
    %668 = vmatprep.subr.mxu0 0.0
    %669 = vmatpush1.msra.mxu0 0.0
    %670 = vmatprep.subr.mxu0 0.0
    %671 = vmatpush1.msra.mxu0 0.0
    %672 = vmatprep.subr.mxu0 0.0
    %673 = vmatpush1.msra.mxu0 0.0
    %674 = vmatprep.subr.mxu0 0.0
    %675 = vmatpush1.msra.mxu0 0.0
    %676 = vmatprep.subr.mxu0 0.0
    %677 = vmatpush1.msra.mxu0 0.0
    %678 = vmatprep.subr.mxu0 0.0
    %679 = vmatpush1.msra.mxu0 0.0
    %680 = vmatprep.subr.mxu0 0.0
    %681 = vmatpush1.msra.mxu0 0.0
    %682 = vmatprep.subr.mxu0 0.0
    %683 = vmatpush1.msra.mxu0 0.0
    %684 = vmatprep.subr.mxu0 0.0
    %685 = vmatpush1.msra.mxu0 0.0
    %686 = vmatprep.subr.mxu0 0.0
    %687 = vmatpush1.msra.mxu0 0.0
    %688 = vmatprep.subr.mxu0 0.0
    %689 = vmatpush1.msra.mxu0 0.0
    %690 = vmatprep.subr.mxu0 0.0
    %691 = vmatpush1.msra.mxu0 0.0
    %692 = vmatprep.mubr.f32.mxu0 0.0
    %693 = vmatmul.mubr.f32.gmra.mrb[0].mxu0 %v541
    %v694 = vpop.f32.mrb[0].mxu0
    %v695 = vadd.f32 0.0, %v694
    %v696 = vpop.f32.mrb[0].mxu0
    %697 = vdwg.mxu0
    %v698 = vmul.f32 %v625, 0.001953125
    %v699 = vmul.f32 %v695, 0.001953125
    %v700 = vmul.f32 %v698, %v698
    %v701 = vsub.f32 %v699, %v700
    %v702 = vld [vmem:[#allocation8] sm:$0x1]
    %v703 = vadd.f32 %v701, 1e-05
    %v704 = vrsqrt.pop %v703
    %v705 = vmul.f32 %v702, %v704
    %v706 = vld [vmem:[#allocation10] sm:$0x1]
    %v707 = vmul.f32 %v698, %v705
    %v708 = vsub.f32 %v706, %v707
    %v710 = vlaneseq
    %v711 = vshrl.u32 %v710, 7
    %v712 = vsub.s32 0, %v711
    %v713 = vrot.slane %v705, %v712
    %v715 = vmul.f32 %v506, %v713
    %v716 = vmul.f32 %v509, %v713
    %v717 = vmul.f32 %v514, %v713
    %v718 = vmul.f32 %v517, %v713
    %v720 = vlaneseq
    %v721 = vshrl.u32 %v720, 7
    %v722 = vsub.s32 0, %v721
    %v723 = vrot.slane %v708, %v722
    %v725 = vadd.f32 %v715, %v723
    %v726 = vadd.f32 %v716, %v723
    %v727 = vadd.f32 %v717, %v723
    %v728 = vadd.f32 %v718, %v723
    %v729 = vmax.f32 %v725, 0.0
    %v730 = vmax.f32 %v726, 0.0
    %v731 = vmax.f32 %v727, 0.0
    %v732 = vmax.f32 %v728, 0.0
    %v733 = vpack.c.bf16 %v730, %v729
    %v734 = vpack.c.bf16 %v732, %v731
    %v735 = vld [vmem:[#allocation14] sm:$0xf]
    %v736 = vld [vmem:[#allocation14 + $0x4] sm:$0xf]
    %v737 = vld [vmem:[#allocation14 + $0x8] sm:$0xf]
    %v738 = vld [vmem:[#allocation14 + $0xc] sm:$0xf]
    %v743 = vunpack.c.l.b16 %v735
    %v744 = vunpack.c.l.b16 %v736
    %v745 = vunpack.c.l.b16 %v737
    %v746 = vunpack.c.l.b16 %v738
    %v747 = vpack.c.b16 %v744, %v743
    %v748 = vpack.c.b16 %v746, %v745
    %vm749 = vcmask 261120
    %v751 = vsel %vm749, %v747, 0
    %v754 = vsel %vm749, %v748, 0
    %756 = vmatprep.subr.bf16.mxu0 0
    %757 = vmatpush1.bf16.msra.mxu0 %v733
    %758 = vmatprep.subr.bf16.mxu0 0
    %759 = vmatpush1.bf16.msra.mxu0 %v734
    %760 = vmatprep.subr.bf16.mxu0 0
    %761 = vmatpush1.bf16.msra.mxu0 0
    %762 = vmatprep.subr.bf16.mxu0 0
    %763 = vmatpush1.bf16.msra.mxu0 0
    %764 = vmatprep.subr.bf16.mxu0 0
    %765 = vmatpush1.bf16.msra.mxu0 0
    %766 = vmatprep.subr.bf16.mxu0 0
    %767 = vmatpush1.bf16.msra.mxu0 0
    %768 = vmatprep.subr.bf16.mxu0 0
    %769 = vmatpush1.bf16.msra.mxu0 0
    %770 = vmatprep.subr.bf16.mxu0 0
    %771 = vmatpush1.bf16.msra.mxu0 0
    %772 = vmatprep.subr.bf16.mxu0 0
    %773 = vmatpush1.bf16.msra.mxu0 0
    %774 = vmatprep.subr.bf16.mxu0 0
    %775 = vmatpush1.bf16.msra.mxu0 0
    %776 = vmatprep.subr.bf16.mxu0 0
    %777 = vmatpush1.bf16.msra.mxu0 0
    %778 = vmatprep.subr.bf16.mxu0 0
    %779 = vmatpush1.bf16.msra.mxu0 0
    %780 = vmatprep.subr.bf16.mxu0 0
    %781 = vmatpush1.bf16.msra.mxu0 0
    %782 = vmatprep.subr.bf16.mxu0 0
    %783 = vmatpush1.bf16.msra.mxu0 0
    %784 = vmatprep.subr.bf16.mxu0 0
    %785 = vmatpush1.bf16.msra.mxu0 0
    %786 = vmatprep.subr.bf16.mxu0 0
    %787 = vmatpush1.bf16.msra.mxu0 0
    %788 = vmatprep.mubr.bf16.mxu0 0
    %789 = vmatmul.mubr.bf16.gmra.mrb[0].mxu0 %v751
    %v790 = vpop.f32.mrb[0].mxu0
    %v791 = vadd.f32 0.0, %v790
    %v792 = vpop.f32.mrb[0].mxu0
    %v793 = vpop.f32.mrb[0].mxu0
    %v794 = vadd.f32 0.0, %v793
    %v795 = vpop.f32.mrb[0].mxu0
    %796 = vmatprep.mubr.bf16.mxu0 0
    %797 = vmatmul.mubr.bf16.gmra.mrb[0].mxu0 %v754
    %v798 = vpop.f32.mrb[0].mxu0
    %v799 = vadd.f32 0.0, %v798
    %v800 = vpop.f32.mrb[0].mxu0
    %v801 = vpop.f32.mrb[0].mxu0
    %v802 = vadd.f32 0.0, %v801
    %v803 = vpop.f32.mrb[0].mxu0
    %804 = vdwg.mxu0
    %v805 = vpack.c.bf16 %v794, %v791
    %v806 = vpack.c.bf16 %v802, %v799
    %v807 = vld [vmem:[#allocation16] sm:$0xf]
    %v808 = vld [vmem:[#allocation16 + $0x4] sm:$0xf]
    %v809 = vld [vmem:[#allocation16 + $0x8] sm:$0xf]
    %v810 = vld [vmem:[#allocation16 + $0xc] sm:$0xf]
    %v815 = vunpack.c.l.b16 %v807
    %v816 = vunpack.c.l.b16 %v808
    %v817 = vunpack.c.l.b16 %v809
    %v818 = vunpack.c.l.b16 %v810
    %v819 = vpack.c.b16 %v816, %v815
    %v820 = vpack.c.b16 %v818, %v817
    %v822 = vsel %vm749, %v819, 0
    %v825 = vsel %vm749, %v820, 0
    %827 = vmatprep.subr.bf16.mxu0 0
    %828 = vmatpush1.bf16.msra.mxu0 %v733
    %829 = vmatprep.subr.bf16.mxu0 0
    %830 = vmatpush1.bf16.msra.mxu0 %v734
    %831 = vmatprep.subr.bf16.mxu0 0
    %832 = vmatpush1.bf16.msra.mxu0 0
    %833 = vmatprep.subr.bf16.mxu0 0
    %834 = vmatpush1.bf16.msra.mxu0 0
    %835 = vmatprep.subr.bf16.mxu0 0
    %836 = vmatpush1.bf16.msra.mxu0 0
    %837 = vmatprep.subr.bf16.mxu0 0
    %838 = vmatpush1.bf16.msra.mxu0 0
    %839 = vmatprep.subr.bf16.mxu0 0
    %840 = vmatpush1.bf16.msra.mxu0 0
    %841 = vmatprep.subr.bf16.mxu0 0
    %842 = vmatpush1.bf16.msra.mxu0 0
    %843 = vmatprep.subr.bf16.mxu0 0
    %844 = vmatpush1.bf16.msra.mxu0 0
    %845 = vmatprep.subr.bf16.mxu0 0
    %846 = vmatpush1.bf16.msra.mxu0 0
    %847 = vmatprep.subr.bf16.mxu0 0
    %848 = vmatpush1.bf16.msra.mxu0 0
    %849 = vmatprep.subr.bf16.mxu0 0
    %850 = vmatpush1.bf16.msra.mxu0 0
    %851 = vmatprep.subr.bf16.mxu0 0
    %852 = vmatpush1.bf16.msra.mxu0 0
    %853 = vmatprep.subr.bf16.mxu0 0
    %854 = vmatpush1.bf16.msra.mxu0 0
    %855 = vmatprep.subr.bf16.mxu0 0
    %856 = vmatpush1.bf16.msra.mxu0 0
    %857 = vmatprep.subr.bf16.mxu0 0
    %858 = vmatpush1.bf16.msra.mxu0 0
    %859 = vmatprep.mubr.bf16.mxu0 0
    %860 = vmatmul.mubr.bf16.gmra.mrb[0].mxu0 %v822
    %v861 = vpop.f32.mrb[0].mxu0
    %v862 = vadd.f32 0.0, %v861
    %v863 = vpop.f32.mrb[0].mxu0
    %v864 = vpop.f32.mrb[0].mxu0
    %v865 = vadd.f32 0.0, %v864
    %v866 = vpop.f32.mrb[0].mxu0
    %867 = vmatprep.mubr.bf16.mxu0 0
    %868 = vmatmul.mubr.bf16.gmra.mrb[0].mxu0 %v825
    %v869 = vpop.f32.mrb[0].mxu0
    %v870 = vadd.f32 0.0, %v869
    %v871 = vpop.f32.mrb[0].mxu0
    %v872 = vpop.f32.mrb[0].mxu0
    %v873 = vadd.f32 0.0, %v872
    %v874 = vpop.f32.mrb[0].mxu0
    %875 = vdwg.mxu0
    %v876 = vpack.c.bf16 %v865, %v862
    %v877 = vpack.c.bf16 %v873, %v870
    %v878 = vld [vmem:[#allocation17] sm:$0xf]
    %v879 = vld [vmem:[#allocation17 + $0x4] sm:$0xf]
    %v880 = vld [vmem:[#allocation17 + $0x8] sm:$0xf]
    %v881 = vld [vmem:[#allocation17 + $0xc] sm:$0xf]
    %v882 = vld [vmem:[#allocation17 + $0x10] sm:$0xf]
    %v883 = vld [vmem:[#allocation17 + $0x14] sm:$0xf]
    %v884 = vld [vmem:[#allocation17 + $0x18] sm:$0xf]
    %v885 = vld [vmem:[#allocation17 + $0x1c] sm:$0xf]
    %v886 = vld [vmem:[#allocation17 + $0x20] sm:$0xf]
    %v887 = vld [vmem:[#allocation17 + $0x24] sm:$0xf]
    %v888 = vld [vmem:[#allocation17 + $0x28] sm:$0xf]
    %v889 = vld [vmem:[#allocation17 + $0x2c] sm:$0xf]
    %v890 = vld [vmem:[#allocation17 + $0x30] sm:$0xf]
    %v891 = vld [vmem:[#allocation17 + $0x34] sm:$0xf]
    %v892 = vld [vmem:[#allocation17 + $0x38] sm:$0xf]
    %v893 = vld [vmem:[#allocation17 + $0x3c] sm:$0xf]
    %s894 = scalar_lea.vmem [#allocation17], 64
    %v895 = vld [vmem:[%s894] sm:$0xf]
    %v896 = vld [vmem:[%s894 + $0x4] sm:$0xf]
    %v897 = vld [vmem:[%s894 + $0x8] sm:$0xf]
    %v898 = vld [vmem:[%s894 + $0xc] sm:$0xf]
    %v899 = vld [vmem:[%s894 + $0x10] sm:$0xf]
    %v900 = vld [vmem:[%s894 + $0x14] sm:$0xf]
    %v901 = vld [vmem:[%s894 + $0x18] sm:$0xf]
    %v902 = vld [vmem:[%s894 + $0x1c] sm:$0xf]
    %v903 = vld [vmem:[%s894 + $0x20] sm:$0xf]
    %v904 = vld [vmem:[%s894 + $0x24] sm:$0xf]
    %v905 = vld [vmem:[%s894 + $0x28] sm:$0xf]
    %v906 = vld [vmem:[%s894 + $0x2c] sm:$0xf]
    %v907 = vld [vmem:[%s894 + $0x30] sm:$0xf]
    %v908 = vld [vmem:[%s894 + $0x34] sm:$0xf]
    %v909 = vld [vmem:[%s894 + $0x38] sm:$0xf]
    %v910 = vld [vmem:[%s894 + $0x3c] sm:$0xf]
    %v927 = vunpack.c.l.b16 %v895
    %v928 = vunpack.c.l.b16 %v896
    %v929 = vunpack.c.l.b16 %v897
    %v930 = vunpack.c.l.b16 %v898
    %v931 = vunpack.c.l.b16 %v899
    %v932 = vunpack.c.l.b16 %v900
    %v933 = vunpack.c.l.b16 %v901
    %v934 = vunpack.c.l.b16 %v902
    %v935 = vunpack.c.l.b16 %v903
    %v936 = vunpack.c.l.b16 %v904
    %v937 = vunpack.c.l.b16 %v905
    %v938 = vunpack.c.l.b16 %v906
    %v939 = vunpack.c.l.b16 %v907
    %v940 = vunpack.c.l.b16 %v908
    %v941 = vunpack.c.l.b16 %v909
    %v942 = vunpack.c.l.b16 %v910
    %v943 = vpack.c.b16 %v928, %v927
    %v944 = vpack.c.b16 %v930, %v929
    %v945 = vpack.c.b16 %v932, %v931
    %v946 = vpack.c.b16 %v934, %v933
    %v947 = vpack.c.b16 %v936, %v935
    %v948 = vpack.c.b16 %v938, %v937
    %v949 = vpack.c.b16 %v940, %v939
    %v950 = vpack.c.b16 %v942, %v941
    %959 = vmatprep.subr.bf16.mxu0 0
    %960 = vmatpush1.bf16.msra.mxu0 %v943
    %961 = vmatprep.subr.bf16.mxu0 0
    %962 = vmatpush1.bf16.msra.mxu0 %v944
    %963 = vmatprep.subr.bf16.mxu0 0
    %964 = vmatpush1.bf16.msra.mxu0 %v945
    %965 = vmatprep.subr.bf16.mxu0 0
    %966 = vmatpush1.bf16.msra.mxu0 %v946
    %967 = vmatprep.subr.bf16.mxu0 0
    %968 = vmatpush1.bf16.msra.mxu0 %v947
    %969 = vmatprep.subr.bf16.mxu0 0
    %970 = vmatpush1.bf16.msra.mxu0 %v948
    %971 = vmatprep.subr.bf16.mxu0 0
    %972 = vmatpush1.bf16.msra.mxu0 %v949
    %973 = vmatprep.subr.bf16.mxu0 0
    %974 = vmatpush1.bf16.msra.mxu0 %v950
    %975 = vmatprep.subr.bf16.mxu0 0
    %976 = vmatpush1.bf16.msra.mxu0 0
    %977 = vmatprep.subr.bf16.mxu0 0
    %978 = vmatpush1.bf16.msra.mxu0 0
    %979 = vmatprep.subr.bf16.mxu0 0
    %980 = vmatpush1.bf16.msra.mxu0 0
    %981 = vmatprep.subr.bf16.mxu0 0
    %982 = vmatpush1.bf16.msra.mxu0 0
    %983 = vmatprep.subr.bf16.mxu0 0
    %984 = vmatpush1.bf16.msra.mxu0 0
    %985 = vmatprep.subr.bf16.mxu0 0
    %986 = vmatpush1.bf16.msra.mxu0 0
    %987 = vmatprep.subr.bf16.mxu0 0
    %988 = vmatpush1.bf16.msra.mxu0 0
    %989 = vmatprep.subr.bf16.mxu0 0
    %990 = vmatpush1.bf16.msra.mxu0 0
    %991 = vmatprep.mubr.bf16.mxu0 0
    %992 = vmatmul.mubr.bf16.gmra.mrb[0].mxu0 %v733
    %v993 = vpop.f32.mrb[0].mxu0
    %v994 = vadd.f32 0.0, %v993
    %v995 = vpop.f32.mrb[0].mxu0
    %v996 = vpop.f32.mrb[0].mxu0
    %v997 = vadd.f32 0.0, %v996
    %v998 = vpop.f32.mrb[0].mxu0
    %999 = vmatprep.mubr.bf16.mxu0 0
    %1000 = vmatmul.mubr.bf16.gmra.mrb[0].mxu0 %v734
    %v1001 = vpop.f32.mrb[0].mxu0
    %v1002 = vadd.f32 0.0, %v1001
    %v1003 = vpop.f32.mrb[0].mxu0
    %v1004 = vpop.f32.mrb[0].mxu0
    %v1005 = vadd.f32 0.0, %v1004
    %v1006 = vpop.f32.mrb[0].mxu0
    %1007 = vdwg.mxu0
    %v1024 = vunpack.c.l.b16 %v878
    %v1025 = vunpack.c.l.b16 %v879
    %v1026 = vunpack.c.l.b16 %v880
    %v1027 = vunpack.c.l.b16 %v881
    %v1028 = vunpack.c.l.b16 %v882
    %v1029 = vunpack.c.l.b16 %v883
    %v1030 = vunpack.c.l.b16 %v884
    %v1031 = vunpack.c.l.b16 %v885
    %v1032 = vunpack.c.l.b16 %v886
    %v1033 = vunpack.c.l.b16 %v887
    %v1034 = vunpack.c.l.b16 %v888
    %v1035 = vunpack.c.l.b16 %v889
    %v1036 = vunpack.c.l.b16 %v890
    %v1037 = vunpack.c.l.b16 %v891
    %v1038 = vunpack.c.l.b16 %v892
    %v1039 = vunpack.c.l.b16 %v893
    %v1040 = vpack.c.b16 %v1025, %v1024
    %v1041 = vpack.c.b16 %v1027, %v1026
    %v1042 = vpack.c.b16 %v1029, %v1028
    %v1043 = vpack.c.b16 %v1031, %v1030
    %v1044 = vpack.c.b16 %v1033, %v1032
    %v1045 = vpack.c.b16 %v1035, %v1034
    %v1046 = vpack.c.b16 %v1037, %v1036
    %v1047 = vpack.c.b16 %v1039, %v1038
    %1056 = vmatprep.subr.bf16.mxu0 0
    %1057 = vmatpush1.bf16.msra.mxu0 %v1040
    %1058 = vmatprep.subr.bf16.mxu0 0
    %1059 = vmatpush1.bf16.msra.mxu0 %v1041
    %1060 = vmatprep.subr.bf16.mxu0 0
    %1061 = vmatpush1.bf16.msra.mxu0 %v1042
    %1062 = vmatprep.subr.bf16.mxu0 0
    %1063 = vmatpush1.bf16.msra.mxu0 %v1043
    %1064 = vmatprep.subr.bf16.mxu0 0
    %1065 = vmatpush1.bf16.msra.mxu0 %v1044
    %1066 = vmatprep.subr.bf16.mxu0 0
    %1067 = vmatpush1.bf16.msra.mxu0 %v1045
    %1068 = vmatprep.subr.bf16.mxu0 0
    %1069 = vmatpush1.bf16.msra.mxu0 %v1046
    %1070 = vmatprep.subr.bf16.mxu0 0
    %1071 = vmatpush1.bf16.msra.mxu0 %v1047
    %1072 = vmatprep.subr.bf16.mxu0 0
    %1073 = vmatpush1.bf16.msra.mxu0 0
    %1074 = vmatprep.subr.bf16.mxu0 0
    %1075 = vmatpush1.bf16.msra.mxu0 0
    %1076 = vmatprep.subr.bf16.mxu0 0
    %1077 = vmatpush1.bf16.msra.mxu0 0
    %1078 = vmatprep.subr.bf16.mxu0 0
    %1079 = vmatpush1.bf16.msra.mxu0 0
    %1080 = vmatprep.subr.bf16.mxu0 0
    %1081 = vmatpush1.bf16.msra.mxu0 0
    %1082 = vmatprep.subr.bf16.mxu0 0
    %1083 = vmatpush1.bf16.msra.mxu0 0
    %1084 = vmatprep.subr.bf16.mxu0 0
    %1085 = vmatpush1.bf16.msra.mxu0 0
    %1086 = vmatprep.subr.bf16.mxu0 0
    %1087 = vmatpush1.bf16.msra.mxu0 0
    %1088 = vmatprep.mubr.bf16.mxu0 0
    %1089 = vmatmul.mubr.bf16.gmra.mrb[0].mxu0 %v805
    %v1090 = vpop.f32.mrb[0].mxu0
    %v1091 = vadd.f32 %v994, %v1090
    %v1092 = vpop.f32.mrb[0].mxu0
    %v1093 = vpop.f32.mrb[0].mxu0
    %v1094 = vadd.f32 %v997, %v1093
    %v1095 = vpop.f32.mrb[0].mxu0
    %1096 = vmatprep.mubr.bf16.mxu0 0
    %1097 = vmatmul.mubr.bf16.gmra.mrb[0].mxu0 %v806
    %v1098 = vpop.f32.mrb[0].mxu0
    %v1099 = vadd.f32 %v1002, %v1098
    %v1100 = vpop.f32.mrb[0].mxu0
    %v1101 = vpop.f32.mrb[0].mxu0
    %v1102 = vadd.f32 %v1005, %v1101
    %v1103 = vpop.f32.mrb[0].mxu0
    %1104 = vdwg.mxu0
    %s1105 = scalar_lea.vmem [#allocation17], 128
    %v1106 = vld [vmem:[%s1105] sm:$0xf]
    %v1107 = vld [vmem:[%s1105 + $0x4] sm:$0xf]
    %v1108 = vld [vmem:[%s1105 + $0x8] sm:$0xf]
    %v1109 = vld [vmem:[%s1105 + $0xc] sm:$0xf]
    %v1110 = vld [vmem:[%s1105 + $0x10] sm:$0xf]
    %v1111 = vld [vmem:[%s1105 + $0x14] sm:$0xf]
    %v1112 = vld [vmem:[%s1105 + $0x18] sm:$0xf]
    %v1113 = vld [vmem:[%s1105 + $0x1c] sm:$0xf]
    %v1114 = vld [vmem:[%s1105 + $0x20] sm:$0xf]
    %v1115 = vld [vmem:[%s1105 + $0x24] sm:$0xf]
    %v1116 = vld [vmem:[%s1105 + $0x28] sm:$0xf]
    %v1117 = vld [vmem:[%s1105 + $0x2c] sm:$0xf]
    %v1118 = vld [vmem:[%s1105 + $0x30] sm:$0xf]
    %v1119 = vld [vmem:[%s1105 + $0x34] sm:$0xf]
    %v1120 = vld [vmem:[%s1105 + $0x38] sm:$0xf]
    %v1121 = vld [vmem:[%s1105 + $0x3c] sm:$0xf]
    %v1138 = vunpack.c.l.b16 %v1106
    %v1139 = vunpack.c.l.b16 %v1107
    %v1140 = vunpack.c.l.b16 %v1108
    %v1141 = vunpack.c.l.b16 %v1109
    %v1142 = vunpack.c.l.b16 %v1110
    %v1143 = vunpack.c.l.b16 %v1111
    %v1144 = vunpack.c.l.b16 %v1112
    %v1145 = vunpack.c.l.b16 %v1113
    %v1146 = vunpack.c.l.b16 %v1114
    %v1147 = vunpack.c.l.b16 %v1115
    %v1148 = vunpack.c.l.b16 %v1116
    %v1149 = vunpack.c.l.b16 %v1117
    %v1150 = vunpack.c.l.b16 %v1118
    %v1151 = vunpack.c.l.b16 %v1119
    %v1152 = vunpack.c.l.b16 %v1120
    %v1153 = vunpack.c.l.b16 %v1121
    %v1154 = vpack.c.b16 %v1139, %v1138
    %v1155 = vpack.c.b16 %v1141, %v1140
    %v1156 = vpack.c.b16 %v1143, %v1142
    %v1157 = vpack.c.b16 %v1145, %v1144
    %v1158 = vpack.c.b16 %v1147, %v1146
    %v1159 = vpack.c.b16 %v1149, %v1148
    %v1160 = vpack.c.b16 %v1151, %v1150
    %v1161 = vpack.c.b16 %v1153, %v1152
    %1170 = vmatprep.subr.bf16.mxu0 0
    %1171 = vmatpush1.bf16.msra.mxu0 %v1154
    %1172 = vmatprep.subr.bf16.mxu0 0
    %1173 = vmatpush1.bf16.msra.mxu0 %v1155
    %1174 = vmatprep.subr.bf16.mxu0 0
    %1175 = vmatpush1.bf16.msra.mxu0 %v1156
    %1176 = vmatprep.subr.bf16.mxu0 0
    %1177 = vmatpush1.bf16.msra.mxu0 %v1157
    %1178 = vmatprep.subr.bf16.mxu0 0
    %1179 = vmatpush1.bf16.msra.mxu0 %v1158
    %1180 = vmatprep.subr.bf16.mxu0 0
    %1181 = vmatpush1.bf16.msra.mxu0 %v1159
    %1182 = vmatprep.subr.bf16.mxu0 0
    %1183 = vmatpush1.bf16.msra.mxu0 %v1160
    %1184 = vmatprep.subr.bf16.mxu0 0
    %1185 = vmatpush1.bf16.msra.mxu0 %v1161
    %1186 = vmatprep.subr.bf16.mxu0 0
    %1187 = vmatpush1.bf16.msra.mxu0 0
    %1188 = vmatprep.subr.bf16.mxu0 0
    %1189 = vmatpush1.bf16.msra.mxu0 0
    %1190 = vmatprep.subr.bf16.mxu0 0
    %1191 = vmatpush1.bf16.msra.mxu0 0
    %1192 = vmatprep.subr.bf16.mxu0 0
    %1193 = vmatpush1.bf16.msra.mxu0 0
    %1194 = vmatprep.subr.bf16.mxu0 0
    %1195 = vmatpush1.bf16.msra.mxu0 0
    %1196 = vmatprep.subr.bf16.mxu0 0
    %1197 = vmatpush1.bf16.msra.mxu0 0
    %1198 = vmatprep.subr.bf16.mxu0 0
    %1199 = vmatpush1.bf16.msra.mxu0 0
    %1200 = vmatprep.subr.bf16.mxu0 0
    %1201 = vmatpush1.bf16.msra.mxu0 0
    %1202 = vmatprep.mubr.bf16.mxu0 0
    %1203 = vmatmul.mubr.bf16.gmra.mrb[0].mxu0 %v876
    %v1204 = vpop.f32.mrb[0].mxu0
    %v1205 = vadd.f32 0.0, %v1204
    %v1206 = vpop.f32.mrb[0].mxu0
    %v1207 = vpop.f32.mrb[0].mxu0
    %v1208 = vadd.f32 0.0, %v1207
    %v1209 = vpop.f32.mrb[0].mxu0
    %1210 = vmatprep.mubr.bf16.mxu0 0
    %1211 = vmatmul.mubr.bf16.gmra.mrb[0].mxu0 %v877
    %v1212 = vpop.f32.mrb[0].mxu0
    %v1213 = vadd.f32 0.0, %v1212
    %v1214 = vpop.f32.mrb[0].mxu0
    %v1215 = vpop.f32.mrb[0].mxu0
    %v1216 = vadd.f32 0.0, %v1215
    %v1217 = vpop.f32.mrb[0].mxu0
    %1218 = vdwg.mxu0
    %v1219 = vadd.f32 %v1091, %v1205
    %v1220 = vadd.f32 %v1094, %v1208
    %v1221 = vadd.f32 %v1099, %v1213
    %v1222 = vadd.f32 %v1102, %v1216
    %v1223 = vadd.f32 %v1219, %v1220
    %v1224 = vadd.f32 %v1223, %v1221
    %v1225 = vadd.f32 %v1224, %v1222
    %v1226 = vrot.slane %v1225, 4
    %v1227 = vadd.f32 %v1225, %v1226
    %v1228 = vrot.slane %v1227, 2
    %v1229 = vadd.f32 %v1227, %v1228
    %v1230 = vrot.slane %v1229, 1
    %v1231 = vadd.f32 %v1229, %v1230
    %v1232 = vmul.f32 %v1219, %v1219
    %v1233 = vmul.f32 %v1220, %v1220
    %v1234 = vmul.f32 %v1221, %v1221
    %v1235 = vmul.f32 %v1222, %v1222
    %v1236 = vadd.f32 %v1232, %v1233
    %v1237 = vadd.f32 %v1236, %v1234
    %v1238 = vadd.f32 %v1237, %v1235
    %v1239 = vrot.slane %v1238, 4
    %v1240 = vadd.f32 %v1238, %v1239
    %v1241 = vrot.slane %v1240, 2
    %v1242 = vadd.f32 %v1240, %v1241
    %v1243 = vrot.slane %v1242, 1
    %v1244 = vadd.f32 %v1242, %v1243
    %1245 = vmatprep.subr.mxu0 0.0
    %1246 = vmatpush1.msra.mxu0 %v542
    %1247 = vmatprep.subr.mxu0 0.0
    %1248 = vmatpush1.msra.mxu0 %v543
    %1249 = vmatprep.subr.mxu0 0.0
    %1250 = vmatpush1.msra.mxu0 %v544
    %1251 = vmatprep.subr.mxu0 0.0
    %1252 = vmatpush1.msra.mxu0 %v545
    %1253 = vmatprep.subr.mxu0 0.0
    %1254 = vmatpush1.msra.mxu0 %v546
    %1255 = vmatprep.subr.mxu0 0.0
    %1256 = vmatpush1.msra.mxu0 %v547
    %1257 = vmatprep.subr.mxu0 0.0
    %1258 = vmatpush1.msra.mxu0 %v548
    %1259 = vmatprep.subr.mxu0 0.0
    %1260 = vmatpush1.msra.mxu0 %v549
    %1261 = vmatprep.subr.mxu0 0.0
    %1262 = vmatpush1.msra.mxu0 %v550
    %1263 = vmatprep.subr.mxu0 0.0
    %1264 = vmatpush1.msra.mxu0 %v551
    %1265 = vmatprep.subr.mxu0 0.0
    %1266 = vmatpush1.msra.mxu0 %v552
    %1267 = vmatprep.subr.mxu0 0.0
    %1268 = vmatpush1.msra.mxu0 %v553
    %1269 = vmatprep.subr.mxu0 0.0
    %1270 = vmatpush1.msra.mxu0 %v554
    %1271 = vmatprep.subr.mxu0 0.0
    %1272 = vmatpush1.msra.mxu0 %v555
    %1273 = vmatprep.subr.mxu0 0.0
    %1274 = vmatpush1.msra.mxu0 %v556
    %1275 = vmatprep.subr.mxu0 0.0
    %1276 = vmatpush1.msra.mxu0 %v557
    %1277 = vmatprep.subr.mxu0 0.0
    %1278 = vmatpush1.msra.mxu0 0.0
    %1279 = vmatprep.subr.mxu0 0.0
    %1280 = vmatpush1.msra.mxu0 0.0
    %1281 = vmatprep.subr.mxu0 0.0
    %1282 = vmatpush1.msra.mxu0 0.0
    %1283 = vmatprep.subr.mxu0 0.0
    %1284 = vmatpush1.msra.mxu0 0.0
    %1285 = vmatprep.subr.mxu0 0.0
    %1286 = vmatpush1.msra.mxu0 0.0
    %1287 = vmatprep.subr.mxu0 0.0
    %1288 = vmatpush1.msra.mxu0 0.0
    %1289 = vmatprep.subr.mxu0 0.0
    %1290 = vmatpush1.msra.mxu0 0.0
    %1291 = vmatprep.subr.mxu0 0.0
    %1292 = vmatpush1.msra.mxu0 0.0
    %1293 = vmatprep.subr.mxu0 0.0
    %1294 = vmatpush1.msra.mxu0 0.0
    %1295 = vmatprep.subr.mxu0 0.0
    %1296 = vmatpush1.msra.mxu0 0.0
    %1297 = vmatprep.subr.mxu0 0.0
    %1298 = vmatpush1.msra.mxu0 0.0
    %1299 = vmatprep.subr.mxu0 0.0
    %1300 = vmatpush1.msra.mxu0 0.0
    %1301 = vmatprep.subr.mxu0 0.0
    %1302 = vmatpush1.msra.mxu0 0.0
    %1303 = vmatprep.subr.mxu0 0.0
    %1304 = vmatpush1.msra.mxu0 0.0
    %1305 = vmatprep.subr.mxu0 0.0
    %1306 = vmatpush1.msra.mxu0 0.0
    %1307 = vmatprep.subr.mxu0 0.0
    %1308 = vmatpush1.msra.mxu0 0.0
    %1309 = vmatprep.mubr.f32.mxu0 0.0
    %1310 = vmatmul.mubr.f32.gmra.mrb[0].mxu0 %v1231
    %v1311 = vpop.f32.mrb[0].mxu0
    %v1312 = vadd.f32 0.0, %v1311
    %v1313 = vpop.f32.mrb[0].mxu0
    %1314 = vdwg.mxu0
    %1315 = vmatprep.subr.mxu0 0.0
    %1316 = vmatpush1.msra.mxu0 %v542
    %1317 = vmatprep.subr.mxu0 0.0
    %1318 = vmatpush1.msra.mxu0 %v543
    %1319 = vmatprep.subr.mxu0 0.0
    %1320 = vmatpush1.msra.mxu0 %v544
    %1321 = vmatprep.subr.mxu0 0.0
    %1322 = vmatpush1.msra.mxu0 %v545
    %1323 = vmatprep.subr.mxu0 0.0
    %1324 = vmatpush1.msra.mxu0 %v546
    %1325 = vmatprep.subr.mxu0 0.0
    %1326 = vmatpush1.msra.mxu0 %v547
    %1327 = vmatprep.subr.mxu0 0.0
    %1328 = vmatpush1.msra.mxu0 %v548
    %1329 = vmatprep.subr.mxu0 0.0
    %1330 = vmatpush1.msra.mxu0 %v549
    %1331 = vmatprep.subr.mxu0 0.0
    %1332 = vmatpush1.msra.mxu0 %v550
    %1333 = vmatprep.subr.mxu0 0.0
    %1334 = vmatpush1.msra.mxu0 %v551
    %1335 = vmatprep.subr.mxu0 0.0
    %1336 = vmatpush1.msra.mxu0 %v552
    %1337 = vmatprep.subr.mxu0 0.0
    %1338 = vmatpush1.msra.mxu0 %v553
    %1339 = vmatprep.subr.mxu0 0.0
    %1340 = vmatpush1.msra.mxu0 %v554
    %1341 = vmatprep.subr.mxu0 0.0
    %1342 = vmatpush1.msra.mxu0 %v555
    %1343 = vmatprep.subr.mxu0 0.0
    %1344 = vmatpush1.msra.mxu0 %v556
    %1345 = vmatprep.subr.mxu0 0.0
    %1346 = vmatpush1.msra.mxu0 %v557
    %1347 = vmatprep.subr.mxu0 0.0
    %1348 = vmatpush1.msra.mxu0 0.0
    %1349 = vmatprep.subr.mxu0 0.0
    %1350 = vmatpush1.msra.mxu0 0.0
    %1351 = vmatprep.subr.mxu0 0.0
    %1352 = vmatpush1.msra.mxu0 0.0
    %1353 = vmatprep.subr.mxu0 0.0
    %1354 = vmatpush1.msra.mxu0 0.0
    %1355 = vmatprep.subr.mxu0 0.0
    %1356 = vmatpush1.msra.mxu0 0.0
    %1357 = vmatprep.subr.mxu0 0.0
    %1358 = vmatpush1.msra.mxu0 0.0
    %1359 = vmatprep.subr.mxu0 0.0
    %1360 = vmatpush1.msra.mxu0 0.0
    %1361 = vmatprep.subr.mxu0 0.0
    %1362 = vmatpush1.msra.mxu0 0.0
    %1363 = vmatprep.subr.mxu0 0.0
    %1364 = vmatpush1.msra.mxu0 0.0
    %1365 = vmatprep.subr.mxu0 0.0
    %1366 = vmatpush1.msra.mxu0 0.0
    %1367 = vmatprep.subr.mxu0 0.0
    %1368 = vmatpush1.msra.mxu0 0.0
    %1369 = vmatprep.subr.mxu0 0.0
    %1370 = vmatpush1.msra.mxu0 0.0
    %1371 = vmatprep.subr.mxu0 0.0
    %1372 = vmatpush1.msra.mxu0 0.0
    %1373 = vmatprep.subr.mxu0 0.0
    %1374 = vmatpush1.msra.mxu0 0.0
    %1375 = vmatprep.subr.mxu0 0.0
    %1376 = vmatpush1.msra.mxu0 0.0
    %1377 = vmatprep.subr.mxu0 0.0
    %1378 = vmatpush1.msra.mxu0 0.0
    %1379 = vmatprep.mubr.f32.mxu0 0.0
    %1380 = vmatmul.mubr.f32.gmra.mrb[0].mxu0 %v1244
    %v1381 = vpop.f32.mrb[0].mxu0
    %v1382 = vadd.f32 0.0, %v1381
    %v1383 = vpop.f32.mrb[0].mxu0
    %1384 = vdwg.mxu0
    %v1385 = vmul.f32 %v1312, 0.001953125
    %v1386 = vmul.f32 %v1382, 0.001953125
    %v1387 = vmul.f32 %v1385, %v1385
    %v1388 = vsub.f32 %v1386, %v1387
    %v1389 = vld [vmem:[#allocation11] sm:$0x1]
    %v1390 = vadd.f32 %v1388, 1e-05
    %v1391 = vrsqrt.pop %v1390
    %v1392 = vmul.f32 %v1389, %v1391
    %v1393 = vld [vmem:[#allocation13] sm:$0x1]
    %v1394 = vmul.f32 %v1385, %v1392
    %v1395 = vsub.f32 %v1393, %v1394
    %v1397 = vlaneseq
    %v1398 = vshrl.u32 %v1397, 7
    %v1399 = vsub.s32 0, %v1398
    %v1400 = vrot.slane %v1392, %v1399
    %v1402 = vmul.f32 %v1219, %v1400
    %v1403 = vmul.f32 %v1220, %v1400
    %v1404 = vmul.f32 %v1221, %v1400
    %v1405 = vmul.f32 %v1222, %v1400
    %v1407 = vlaneseq
    %v1408 = vshrl.u32 %v1407, 7
    %v1409 = vsub.s32 0, %v1408
    %v1410 = vrot.slane %v1395, %v1409
    %v1412 = vadd.f32 %v1402, %v1410
    %v1413 = vadd.f32 %v1403, %v1410
    %v1414 = vadd.f32 %v1404, %v1410
    %v1415 = vadd.f32 %v1405, %v1410
    %v1416 = vmax.f32 %v1412, 0.0
    %v1417 = vmax.f32 %v1413, 0.0
    %v1418 = vmax.f32 %v1414, 0.0
    %v1419 = vmax.f32 %v1415, 0.0
    %v1420 = vpack.c.bf16 %v1417, %v1416
    %v1421 = vpack.c.bf16 %v1419, %v1418
    %v1422 = vld [vmem:[#allocation19] sm:$0xff]
    %v1423 = vld [vmem:[#allocation19 + $0x8] sm:$0xff]
    %v1424 = vld [vmem:[#allocation19 + $0x10] sm:$0xff]
    %v1425 = vld [vmem:[#allocation19 + $0x18] sm:$0xff]
    %v1426 = vld [vmem:[#allocation19 + $0x20] sm:$0xff]
    %v1427 = vld [vmem:[#allocation19 + $0x28] sm:$0xff]
    %v1428 = vld [vmem:[#allocation19 + $0x30] sm:$0xff]
    %v1429 = vld [vmem:[#allocation19 + $0x38] sm:$0xff]
    %v1430 = vld [vmem:[#allocation19 + $0x40] sm:$0xff]
    %v1431 = vld [vmem:[#allocation19 + $0x48] sm:$0xff]
    %v1432 = vld [vmem:[#allocation19 + $0x50] sm:$0xff]
    %v1433 = vld [vmem:[#allocation19 + $0x58] sm:$0xff]
    %v1434 = vld [vmem:[#allocation19 + $0x60] sm:$0xff]
    %v1435 = vld [vmem:[#allocation19 + $0x68] sm:$0xff]
    %v1436 = vld [vmem:[#allocation19 + $0x70] sm:$0xff]
    %v1437 = vld [vmem:[#allocation19 + $0x78] sm:$0xff]
    %v1438 = vld [vmem:[#allocation19 + $0x80] sm:$0xff]
    %v1439 = vld [vmem:[#allocation19 + $0x88] sm:$0xff]
    %v1440 = vld [vmem:[#allocation19 + $0x90] sm:$0xff]
    %v1441 = vld [vmem:[#allocation19 + $0x98] sm:$0xff]
    %v1442 = vld [vmem:[#allocation19 + $0xa0] sm:$0xff]
    %v1443 = vld [vmem:[#allocation19 + $0xa8] sm:$0xff]
    %v1444 = vld [vmem:[#allocation19 + $0xb0] sm:$0xff]
    %v1445 = vld [vmem:[#allocation19 + $0xb8] sm:$0xff]
    %v1446 = vld [vmem:[#allocation19 + $0xc0] sm:$0xff]
    %v1447 = vld [vmem:[#allocation19 + $0xc8] sm:$0xff]
    %v1448 = vld [vmem:[#allocation19 + $0xd0] sm:$0xff]
    %v1449 = vld [vmem:[#allocation19 + $0xd8] sm:$0xff]
    %v1450 = vld [vmem:[#allocation19 + $0xe0] sm:$0xff]
    %v1451 = vld [vmem:[#allocation19 + $0xe8] sm:$0xff]
    %v1452 = vld [vmem:[#allocation19 + $0xf0] sm:$0xff]
    %v1453 = vld [vmem:[#allocation19 + $0xf8] sm:$0xff]
    %v1454 = vpack.c.bf16 %v208, %v207
    %v1455 = vpack.c.bf16 %v210, %v209
    %v1456 = vld [vmem:[#allocation20] sm:$0xff]
    %v1457 = vld [vmem:[#allocation20 + $0x8] sm:$0xff]
    %v1458 = vld [vmem:[#allocation20 + $0x10] sm:$0xff]
    %v1459 = vld [vmem:[#allocation20 + $0x18] sm:$0xff]
    %v1460 = vld [vmem:[#allocation20 + $0x20] sm:$0xff]
    %v1461 = vld [vmem:[#allocation20 + $0x28] sm:$0xff]
    %v1462 = vld [vmem:[#allocation20 + $0x30] sm:$0xff]
    %v1463 = vld [vmem:[#allocation20 + $0x38] sm:$0xff]
    %v1464 = vld [vmem:[#allocation20 + $0x40] sm:$0xff]
    %v1465 = vld [vmem:[#allocation20 + $0x48] sm:$0xff]
    %v1466 = vld [vmem:[#allocation20 + $0x50] sm:$0xff]
    %v1467 = vld [vmem:[#allocation20 + $0x58] sm:$0xff]
    %v1468 = vld [vmem:[#allocation20 + $0x60] sm:$0xff]
    %v1469 = vld [vmem:[#allocation20 + $0x68] sm:$0xff]
    %v1470 = vld [vmem:[#allocation20 + $0x70] sm:$0xff]
    %v1471 = vld [vmem:[#allocation20 + $0x78] sm:$0xff]
    %v1488 = vunpack.c.l.b16 %v1456
    %v1489 = vunpack.c.h.b16 %v1456
    %v1490 = vunpack.c.l.b16 %v1457
    %v1491 = vunpack.c.h.b16 %v1457
    %v1492 = vunpack.c.l.b16 %v1458
    %v1493 = vunpack.c.h.b16 %v1458
    %v1494 = vunpack.c.l.b16 %v1459
    %v1495 = vunpack.c.h.b16 %v1459
    %v1496 = vunpack.c.l.b16 %v1460
    %v1497 = vunpack.c.h.b16 %v1460
    %v1498 = vunpack.c.l.b16 %v1461
    %v1499 = vunpack.c.h.b16 %v1461
    %v1500 = vunpack.c.l.b16 %v1462
    %v1501 = vunpack.c.h.b16 %v1462
    %v1502 = vunpack.c.l.b16 %v1463
    %v1503 = vunpack.c.h.b16 %v1463
    %v1504 = vunpack.c.l.b16 %v1464
    %v1505 = vunpack.c.h.b16 %v1464
    %v1506 = vunpack.c.l.b16 %v1465
    %v1507 = vunpack.c.h.b16 %v1465
    %v1508 = vunpack.c.l.b16 %v1466
    %v1509 = vunpack.c.h.b16 %v1466
    %v1510 = vunpack.c.l.b16 %v1467
    %v1511 = vunpack.c.h.b16 %v1467
    %v1512 = vunpack.c.l.b16 %v1468
    %v1513 = vunpack.c.h.b16 %v1468
    %v1514 = vunpack.c.l.b16 %v1469
    %v1515 = vunpack.c.h.b16 %v1469
    %v1516 = vunpack.c.l.b16 %v1470
    %v1517 = vunpack.c.h.b16 %v1470
    %v1518 = vunpack.c.l.b16 %v1471
    %v1519 = vunpack.c.h.b16 %v1471
    %v1520 = vpack.c.b16 %v1492, %v1488
    %v1521 = vpack.c.b16 %v1493, %v1489
    %v1522 = vpack.c.b16 %v1494, %v1490
    %v1523 = vpack.c.b16 %v1495, %v1491
    %v1524 = vpack.c.b16 %v1500, %v1496
    %v1525 = vpack.c.b16 %v1501, %v1497
    %v1526 = vpack.c.b16 %v1502, %v1498
    %v1527 = vpack.c.b16 %v1503, %v1499
    %v1528 = vpack.c.b16 %v1508, %v1504
    %v1529 = vpack.c.b16 %v1509, %v1505
    %v1530 = vpack.c.b16 %v1510, %v1506
    %v1531 = vpack.c.b16 %v1511, %v1507
    %v1532 = vpack.c.b16 %v1516, %v1512
    %v1533 = vpack.c.b16 %v1517, %v1513
    %v1534 = vpack.c.b16 %v1518, %v1514
    %v1535 = vpack.c.b16 %v1519, %v1515
    %v1553 = vsel %vm211, %v1454, 0
    %v1556 = vsel %vm211, %v1455, 0
    %1558 = vmatprep.subr.bf16.mxu0 %v1521
    %1559 = vmatpush1.bf16.msra.mxu0 %v1520
    %1560 = vmatprep.subr.bf16.mxu0 %v1525
    %1561 = vmatpush1.bf16.msra.mxu0 %v1524
    %1562 = vmatprep.subr.bf16.mxu0 %v1529
    %1563 = vmatpush1.bf16.msra.mxu0 %v1528
    %1564 = vmatprep.subr.bf16.mxu0 %v1533
    %1565 = vmatpush1.bf16.msra.mxu0 %v1532
    %1566 = vmatprep.subr.bf16.mxu0 0
    %1567 = vmatpush1.bf16.msra.mxu0 0
    %1568 = vmatprep.subr.bf16.mxu0 0
    %1569 = vmatpush1.bf16.msra.mxu0 0
    %1570 = vmatprep.subr.bf16.mxu0 0
    %1571 = vmatpush1.bf16.msra.mxu0 0
    %1572 = vmatprep.subr.bf16.mxu0 0
    %1573 = vmatpush1.bf16.msra.mxu0 0
    %1574 = vmatprep.subr.bf16.mxu0 0
    %1575 = vmatpush1.bf16.msra.mxu0 0
    %1576 = vmatprep.subr.bf16.mxu0 0
    %1577 = vmatpush1.bf16.msra.mxu0 0
    %1578 = vmatprep.subr.bf16.mxu0 0
    %1579 = vmatpush1.bf16.msra.mxu0 0
    %1580 = vmatprep.subr.bf16.mxu0 0
    %1581 = vmatpush1.bf16.msra.mxu0 0
    %1582 = vmatprep.subr.bf16.mxu0 0
    %1583 = vmatpush1.bf16.msra.mxu0 0
    %1584 = vmatprep.subr.bf16.mxu0 0
    %1585 = vmatpush1.bf16.msra.mxu0 0
    %1586 = vmatprep.subr.bf16.mxu0 0
    %1587 = vmatpush1.bf16.msra.mxu0 0
    %1588 = vmatprep.subr.bf16.mxu0 0
    %1589 = vmatpush1.bf16.msra.mxu0 0
    %1590 = vmatprep.mubr.bf16.mxu0 0
    %1591 = vmatmul.mubr.bf16.gmra.mrb[0].mxu0 %v1553
    %v1592 = vpop.f32.mrb[0].mxu0
    %v1593 = vadd.f32 0.0, %v1592
    %v1594 = vpop.f32.mrb[0].mxu0
    %v1595 = vadd.f32 0.0, %v1594
    %v1596 = vpop.f32.mrb[0].mxu0
    %v1597 = vadd.f32 0.0, %v1596
    %v1598 = vpop.f32.mrb[0].mxu0
    %v1599 = vadd.f32 0.0, %v1598
    %1600 = vmatprep.mubr.bf16.mxu0 0
    %1601 = vmatmul.mubr.bf16.gmra.mrb[0].mxu0 %v1556
    %v1602 = vpop.f32.mrb[0].mxu0
    %v1603 = vadd.f32 0.0, %v1602
    %v1604 = vpop.f32.mrb[0].mxu0
    %v1605 = vadd.f32 0.0, %v1604
    %v1606 = vpop.f32.mrb[0].mxu0
    %v1607 = vadd.f32 0.0, %v1606
    %v1608 = vpop.f32.mrb[0].mxu0
    %v1609 = vadd.f32 0.0, %v1608
    %1610 = vdwg.mxu0
    %1611 = vmatprep.subr.bf16.mxu0 %v1523
    %1612 = vmatpush1.bf16.msra.mxu0 %v1522
    %1613 = vmatprep.subr.bf16.mxu0 %v1527
    %1614 = vmatpush1.bf16.msra.mxu0 %v1526
    %1615 = vmatprep.subr.bf16.mxu0 %v1531
    %1616 = vmatpush1.bf16.msra.mxu0 %v1530
    %1617 = vmatprep.subr.bf16.mxu0 %v1535
    %1618 = vmatpush1.bf16.msra.mxu0 %v1534
    %1619 = vmatprep.subr.bf16.mxu0 0
    %1620 = vmatpush1.bf16.msra.mxu0 0
    %1621 = vmatprep.subr.bf16.mxu0 0
    %1622 = vmatpush1.bf16.msra.mxu0 0
    %1623 = vmatprep.subr.bf16.mxu0 0
    %1624 = vmatpush1.bf16.msra.mxu0 0
    %1625 = vmatprep.subr.bf16.mxu0 0
    %1626 = vmatpush1.bf16.msra.mxu0 0
    %1627 = vmatprep.subr.bf16.mxu0 0
    %1628 = vmatpush1.bf16.msra.mxu0 0
    %1629 = vmatprep.subr.bf16.mxu0 0
    %1630 = vmatpush1.bf16.msra.mxu0 0
    %1631 = vmatprep.subr.bf16.mxu0 0
    %1632 = vmatpush1.bf16.msra.mxu0 0
    %1633 = vmatprep.subr.bf16.mxu0 0
    %1634 = vmatpush1.bf16.msra.mxu0 0
    %1635 = vmatprep.subr.bf16.mxu0 0
    %1636 = vmatpush1.bf16.msra.mxu0 0
    %1637 = vmatprep.subr.bf16.mxu0 0
    %1638 = vmatpush1.bf16.msra.mxu0 0
    %1639 = vmatprep.subr.bf16.mxu0 0
    %1640 = vmatpush1.bf16.msra.mxu0 0
    %1641 = vmatprep.subr.bf16.mxu0 0
    %1642 = vmatpush1.bf16.msra.mxu0 0
    %1643 = vmatprep.mubr.bf16.mxu0 0
    %1644 = vmatmul.mubr.bf16.gmra.mrb[0].mxu0 %v1553
    %v1645 = vpop.f32.mrb[0].mxu0
    %v1646 = vadd.f32 0.0, %v1645
    %v1647 = vpop.f32.mrb[0].mxu0
    %v1648 = vadd.f32 0.0, %v1647
    %v1649 = vpop.f32.mrb[0].mxu0
    %v1650 = vadd.f32 0.0, %v1649
    %v1651 = vpop.f32.mrb[0].mxu0
    %v1652 = vadd.f32 0.0, %v1651
    %1653 = vmatprep.mubr.bf16.mxu0 0
    %1654 = vmatmul.mubr.bf16.gmra.mrb[0].mxu0 %v1556
    %v1655 = vpop.f32.mrb[0].mxu0
    %v1656 = vadd.f32 0.0, %v1655
    %v1657 = vpop.f32.mrb[0].mxu0
    %v1658 = vadd.f32 0.0, %v1657
    %v1659 = vpop.f32.mrb[0].mxu0
    %v1660 = vadd.f32 0.0, %v1659
    %v1661 = vpop.f32.mrb[0].mxu0
    %v1662 = vadd.f32 0.0, %v1661
    %1663 = vdwg.mxu0
    %v1696 = vunpack.c.l.b16 %v1422
    %v1697 = vunpack.c.h.b16 %v1422
    %v1698 = vunpack.c.l.b16 %v1423
    %v1699 = vunpack.c.h.b16 %v1423
    %v1700 = vunpack.c.l.b16 %v1424
    %v1701 = vunpack.c.h.b16 %v1424
    %v1702 = vunpack.c.l.b16 %v1425
    %v1703 = vunpack.c.h.b16 %v1425
    %v1704 = vunpack.c.l.b16 %v1426
    %v1705 = vunpack.c.h.b16 %v1426
    %v1706 = vunpack.c.l.b16 %v1427
    %v1707 = vunpack.c.h.b16 %v1427
    %v1708 = vunpack.c.l.b16 %v1428
    %v1709 = vunpack.c.h.b16 %v1428
    %v1710 = vunpack.c.l.b16 %v1429
    %v1711 = vunpack.c.h.b16 %v1429
    %v1712 = vunpack.c.l.b16 %v1430
    %v1713 = vunpack.c.h.b16 %v1430
    %v1714 = vunpack.c.l.b16 %v1431
    %v1715 = vunpack.c.h.b16 %v1431
    %v1716 = vunpack.c.l.b16 %v1432
    %v1717 = vunpack.c.h.b16 %v1432
    %v1718 = vunpack.c.l.b16 %v1433
    %v1719 = vunpack.c.h.b16 %v1433
    %v1720 = vunpack.c.l.b16 %v1434
    %v1721 = vunpack.c.h.b16 %v1434
    %v1722 = vunpack.c.l.b16 %v1435
    %v1723 = vunpack.c.h.b16 %v1435
    %v1724 = vunpack.c.l.b16 %v1436
    %v1725 = vunpack.c.h.b16 %v1436
    %v1726 = vunpack.c.l.b16 %v1437
    %v1727 = vunpack.c.h.b16 %v1437
    %v1728 = vunpack.c.l.b16 %v1438
    %v1729 = vunpack.c.h.b16 %v1438
    %v1730 = vunpack.c.l.b16 %v1439
    %v1731 = vunpack.c.h.b16 %v1439
    %v1732 = vunpack.c.l.b16 %v1440
    %v1733 = vunpack.c.h.b16 %v1440
    %v1734 = vunpack.c.l.b16 %v1441
    %v1735 = vunpack.c.h.b16 %v1441
    %v1736 = vunpack.c.l.b16 %v1442
    %v1737 = vunpack.c.h.b16 %v1442
    %v1738 = vunpack.c.l.b16 %v1443
    %v1739 = vunpack.c.h.b16 %v1443
    %v1740 = vunpack.c.l.b16 %v1444
    %v1741 = vunpack.c.h.b16 %v1444
    %v1742 = vunpack.c.l.b16 %v1445
    %v1743 = vunpack.c.h.b16 %v1445
    %v1744 = vunpack.c.l.b16 %v1446
    %v1745 = vunpack.c.h.b16 %v1446
    %v1746 = vunpack.c.l.b16 %v1447
    %v1747 = vunpack.c.h.b16 %v1447
    %v1748 = vunpack.c.l.b16 %v1448
    %v1749 = vunpack.c.h.b16 %v1448
    %v1750 = vunpack.c.l.b16 %v1449
    %v1751 = vunpack.c.h.b16 %v1449
    %v1752 = vunpack.c.l.b16 %v1450
    %v1753 = vunpack.c.h.b16 %v1450
    %v1754 = vunpack.c.l.b16 %v1451
    %v1755 = vunpack.c.h.b16 %v1451
    %v1756 = vunpack.c.l.b16 %v1452
    %v1757 = vunpack.c.h.b16 %v1452
    %v1758 = vunpack.c.l.b16 %v1453
    %v1759 = vunpack.c.h.b16 %v1453
    %v1760 = vpack.c.b16 %v1700, %v1696
    %v1761 = vpack.c.b16 %v1701, %v1697
    %v1762 = vpack.c.b16 %v1702, %v1698
    %v1763 = vpack.c.b16 %v1703, %v1699
    %v1764 = vpack.c.b16 %v1708, %v1704
    %v1765 = vpack.c.b16 %v1709, %v1705
    %v1766 = vpack.c.b16 %v1710, %v1706
    %v1767 = vpack.c.b16 %v1711, %v1707
    %v1768 = vpack.c.b16 %v1716, %v1712
    %v1769 = vpack.c.b16 %v1717, %v1713
    %v1770 = vpack.c.b16 %v1718, %v1714
    %v1771 = vpack.c.b16 %v1719, %v1715
    %v1772 = vpack.c.b16 %v1724, %v1720
    %v1773 = vpack.c.b16 %v1725, %v1721
    %v1774 = vpack.c.b16 %v1726, %v1722
    %v1775 = vpack.c.b16 %v1727, %v1723
    %v1776 = vpack.c.b16 %v1732, %v1728
    %v1777 = vpack.c.b16 %v1733, %v1729
    %v1778 = vpack.c.b16 %v1734, %v1730
    %v1779 = vpack.c.b16 %v1735, %v1731
    %v1780 = vpack.c.b16 %v1740, %v1736
    %v1781 = vpack.c.b16 %v1741, %v1737
    %v1782 = vpack.c.b16 %v1742, %v1738
    %v1783 = vpack.c.b16 %v1743, %v1739
    %v1784 = vpack.c.b16 %v1748, %v1744
    %v1785 = vpack.c.b16 %v1749, %v1745
    %v1786 = vpack.c.b16 %v1750, %v1746
    %v1787 = vpack.c.b16 %v1751, %v1747
    %v1788 = vpack.c.b16 %v1756, %v1752
    %v1789 = vpack.c.b16 %v1757, %v1753
    %v1790 = vpack.c.b16 %v1758, %v1754
    %v1791 = vpack.c.b16 %v1759, %v1755
    %1824 = vmatprep.subr.bf16.mxu0 %v1761
    %1825 = vmatpush1.bf16.msra.mxu0 %v1760
    %1826 = vmatprep.subr.bf16.mxu0 %v1765
    %1827 = vmatpush1.bf16.msra.mxu0 %v1764
    %1828 = vmatprep.subr.bf16.mxu0 %v1769
    %1829 = vmatpush1.bf16.msra.mxu0 %v1768
    %1830 = vmatprep.subr.bf16.mxu0 %v1773
    %1831 = vmatpush1.bf16.msra.mxu0 %v1772
    %1832 = vmatprep.subr.bf16.mxu0 %v1777
    %1833 = vmatpush1.bf16.msra.mxu0 %v1776
    %1834 = vmatprep.subr.bf16.mxu0 %v1781
    %1835 = vmatpush1.bf16.msra.mxu0 %v1780
    %1836 = vmatprep.subr.bf16.mxu0 %v1785
    %1837 = vmatpush1.bf16.msra.mxu0 %v1784
    %1838 = vmatprep.subr.bf16.mxu0 %v1789
    %1839 = vmatpush1.bf16.msra.mxu0 %v1788
    %1840 = vmatprep.subr.bf16.mxu0 0
    %1841 = vmatpush1.bf16.msra.mxu0 0
    %1842 = vmatprep.subr.bf16.mxu0 0
    %1843 = vmatpush1.bf16.msra.mxu0 0
    %1844 = vmatprep.subr.bf16.mxu0 0
    %1845 = vmatpush1.bf16.msra.mxu0 0
    %1846 = vmatprep.subr.bf16.mxu0 0
    %1847 = vmatpush1.bf16.msra.mxu0 0
    %1848 = vmatprep.subr.bf16.mxu0 0
    %1849 = vmatpush1.bf16.msra.mxu0 0
    %1850 = vmatprep.subr.bf16.mxu0 0
    %1851 = vmatpush1.bf16.msra.mxu0 0
    %1852 = vmatprep.subr.bf16.mxu0 0
    %1853 = vmatpush1.bf16.msra.mxu0 0
    %1854 = vmatprep.subr.bf16.mxu0 0
    %1855 = vmatpush1.bf16.msra.mxu0 0
    %1856 = vmatprep.mubr.bf16.mxu0 0
    %1857 = vmatmul.mubr.bf16.gmra.mrb[0].mxu0 %v1420
    %v1858 = vpop.f32.mrb[0].mxu0
    %v1859 = vadd.f32 %v1593, %v1858
    %v1860 = vpop.f32.mrb[0].mxu0
    %v1861 = vadd.f32 %v1595, %v1860
    %v1862 = vpop.f32.mrb[0].mxu0
    %v1863 = vadd.f32 %v1597, %v1862
    %v1864 = vpop.f32.mrb[0].mxu0
    %v1865 = vadd.f32 %v1599, %v1864
    %1866 = vmatprep.mubr.bf16.mxu0 0
    %1867 = vmatmul.mubr.bf16.gmra.mrb[0].mxu0 %v1421
    %v1868 = vpop.f32.mrb[0].mxu0
    %v1869 = vadd.f32 %v1603, %v1868
    %v1870 = vpop.f32.mrb[0].mxu0
    %v1871 = vadd.f32 %v1605, %v1870
    %v1872 = vpop.f32.mrb[0].mxu0
    %v1873 = vadd.f32 %v1607, %v1872
    %v1874 = vpop.f32.mrb[0].mxu0
    %v1875 = vadd.f32 %v1609, %v1874
    %1876 = vdwg.mxu0
    %1877 = vmatprep.subr.bf16.mxu0 %v1763
    %1878 = vmatpush1.bf16.msra.mxu0 %v1762
    %1879 = vmatprep.subr.bf16.mxu0 %v1767
    %1880 = vmatpush1.bf16.msra.mxu0 %v1766
    %1881 = vmatprep.subr.bf16.mxu0 %v1771
    %1882 = vmatpush1.bf16.msra.mxu0 %v1770
    %1883 = vmatprep.subr.bf16.mxu0 %v1775
    %1884 = vmatpush1.bf16.msra.mxu0 %v1774
    %1885 = vmatprep.subr.bf16.mxu0 %v1779
    %1886 = vmatpush1.bf16.msra.mxu0 %v1778
    %1887 = vmatprep.subr.bf16.mxu0 %v1783
    %1888 = vmatpush1.bf16.msra.mxu0 %v1782
    %1889 = vmatprep.subr.bf16.mxu0 %v1787
    %1890 = vmatpush1.bf16.msra.mxu0 %v1786
    %1891 = vmatprep.subr.bf16.mxu0 %v1791
    %1892 = vmatpush1.bf16.msra.mxu0 %v1790
    %1893 = vmatprep.subr.bf16.mxu0 0
    %1894 = vmatpush1.bf16.msra.mxu0 0
    %1895 = vmatprep.subr.bf16.mxu0 0
    %1896 = vmatpush1.bf16.msra.mxu0 0
    %1897 = vmatprep.subr.bf16.mxu0 0
    %1898 = vmatpush1.bf16.msra.mxu0 0
    %1899 = vmatprep.subr.bf16.mxu0 0
    %1900 = vmatpush1.bf16.msra.mxu0 0
    %1901 = vmatprep.subr.bf16.mxu0 0
    %1902 = vmatpush1.bf16.msra.mxu0 0
    %1903 = vmatprep.subr.bf16.mxu0 0
    %1904 = vmatpush1.bf16.msra.mxu0 0
    %1905 = vmatprep.subr.bf16.mxu0 0
    %1906 = vmatpush1.bf16.msra.mxu0 0
    %1907 = vmatprep.subr.bf16.mxu0 0
    %1908 = vmatpush1.bf16.msra.mxu0 0
    %1909 = vmatprep.mubr.bf16.mxu0 0
    %1910 = vmatmul.mubr.bf16.gmra.mrb[0].mxu0 %v1420
    %v1911 = vpop.f32.mrb[0].mxu0
    %v1912 = vadd.f32 %v1646, %v1911
    %v1913 = vpop.f32.mrb[0].mxu0
    %v1914 = vadd.f32 %v1648, %v1913
    %v1915 = vpop.f32.mrb[0].mxu0
    %v1916 = vadd.f32 %v1650, %v1915
    %v1917 = vpop.f32.mrb[0].mxu0
    %v1918 = vadd.f32 %v1652, %v1917
    %1919 = vmatprep.mubr.bf16.mxu0 0
    %1920 = vmatmul.mubr.bf16.gmra.mrb[0].mxu0 %v1421
    %v1921 = vpop.f32.mrb[0].mxu0
    %v1922 = vadd.f32 %v1656, %v1921
    %v1923 = vpop.f32.mrb[0].mxu0
    %v1924 = vadd.f32 %v1658, %v1923
    %v1925 = vpop.f32.mrb[0].mxu0
    %v1926 = vadd.f32 %v1660, %v1925
    %v1927 = vpop.f32.mrb[0].mxu0
    %v1928 = vadd.f32 %v1662, %v1927
    %1929 = vdwg.mxu0
    %1930 = vst [vmem:[#allocation22] sm:$0xff] %v1859
    %1931 = vst [vmem:[#allocation22 + $0x8] sm:$0xff] %v1861
    %1932 = vst [vmem:[#allocation22 + $0x10] sm:$0xff] %v1912
    %1933 = vst [vmem:[#allocation22 + $0x18] sm:$0xff] %v1914
    %1934 = vst [vmem:[#allocation22 + $0x20] sm:$0xff] %v1863
    %1935 = vst [vmem:[#allocation22 + $0x28] sm:$0xff] %v1865
    %1936 = vst [vmem:[#allocation22 + $0x30] sm:$0xff] %v1916
    %1937 = vst [vmem:[#allocation22 + $0x38] sm:$0xff] %v1918
    %1938 = vst [vmem:[#allocation22 + $0x40] sm:$0xff] %v1869
    %1939 = vst [vmem:[#allocation22 + $0x48] sm:$0xff] %v1871
    %1940 = vst [vmem:[#allocation22 + $0x50] sm:$0xff] %v1922
    %1941 = vst [vmem:[#allocation22 + $0x58] sm:$0xff] %v1924
    %1942 = vst [vmem:[#allocation22 + $0x60] sm:$0xff] %v1873
    %1943 = vst [vmem:[#allocation22 + $0x68] sm:$0xff] %v1875
    %1944 = vst [vmem:[#allocation22 + $0x70] sm:$0xff] %v1926
    %1945 = vst [vmem:[#allocation22 + $0x78] sm:$0xff] %v1928
    // Predicated region
    $region110: #{tpu_custom_call.1} parent=1 // pred_check
      _
    $region111: #{tpu_custom_call.1} parent=1 // pred_check_branch
      %1947 = sbr.rel (0) target = $region113
    $region112: #{tpu_custom_call.1} parent=1 // pred_region
      %s1949 = ssub.s32 2048, 2048
      %1950 = vsyncadd [#allocation4], %s1949
      %s1951 = sshll.u32 [#allocation22], 4
      %s1952 = int_to_ptr.vmem [resolvable:$true] %s1951
      %1957 = dma.vmem_to_hbm [thread:$0]  %s1952, 2048, %s15, [#allocation4], 512, 512, 32
    $region113: #{tpu_custom_call.1} parent=1 // pred_fallthru
      _
    // Predicated region
    $region114: #{tpu_custom_call.1} parent=1 // pred_check
      _
    $region115: #{tpu_custom_call.1} parent=1 // pred_check_branch
      %1959 = sbr.rel (0) target = $region117
    $region116: #{tpu_custom_call.1} parent=1 // pred_region
      %1960 = dma.done [#allocation4], 2048
    $region117: #{tpu_custom_call.1} parent=1 // pred_fallthru
      _
    %1961 = vsyncpa [#allocation3], 1
    %1962 = vsyncpa [#allocation6], 1
    %1963 = vsyncpa [#allocation9], 1
    %1964 = vsyncpa [#allocation12], 1
    %1965 = vsyncpa [#allocation15], 1
    %1966 = vsyncpa [#allocation18], 1
    %1967 = vsyncpa [#allocation21], 1
    %1968 = vsyncpa [#allocation4], 1

</llo_original>
